<compile_context>
chip_gen: v6e
topology: v6e:2x2x1
jax: 0.10.0
libtpu: 0.0.40
codegen_flags: <defaults>
</compile_context>

<pallas_src>
import functools

import jax
import jax.numpy as jnp
from jax import lax
from jax.experimental import pallas as pl
from jax.experimental.pallas import tpu as pltpu


def _attention_kernel(x_ref, wq_ref, wk_ref, wv_ref, wp_ref, b_ref, o_ref,
                      k_cache, v_cache, q_buf, attn_buf, *,
                      num_heads: int, n_actual: int):
    # x_ref  : (1, N_pad, C) bf16   full (padded) sequence of this batch element
    # wq_ref : (C, C) bf16          q weights (in,out layout), softmax scale folded
    # wk_ref : (C, C) bf16
    # wv_ref : (C, C) bf16
    # wp_ref : (C, C) bf16          output-projection weights (in,out layout)
    # b_ref  : (1, C) f32           output-projection bias
    # o_ref  : (1, tq, C)           output tile
    # k_cache/v_cache: (N_pad, C) bf16 VMEM scratch, filled once per batch element
    # q_buf / attn_buf: (tq, C) bf16 VMEM scratch slabs
    t = pl.program_id(1)
    n_pad = x_ref.shape[1]
    C = x_ref.shape[2]
    tq = o_ref.shape[1]
    hd = C // num_heads

    # --- K/V projections: fused, computed once per batch element (t == 0) and
    #     cached in VMEM scratch for all query tiles of this batch element. ---
    @pl.when(t == 0)
    def _():
        xs = x_ref[0]                                                 # (N_pad, C) bf16
        k_cache[...] = jnp.dot(
            xs, wk_ref[...], preferred_element_type=jnp.float32).astype(k_cache.dtype)
        v_cache[...] = jnp.dot(
            xs, wv_ref[...], preferred_element_type=jnp.float32).astype(v_cache.dtype)

    # --- Q projection for this query tile (scale pre-folded into Wq), fused C-wide.
    start = pl.multiple_of(t * tq, tq)
    xq = x_ref[0, pl.ds(start, tq), :]                                # (tq, C) bf16
    q_buf[...] = jnp.dot(
        xq, wq_ref[...], preferred_element_type=jnp.float32).astype(q_buf.dtype)

    # Additive key mask for zero-padded sequence positions (static no-op if no pad).
    if n_actual < n_pad:
        col = lax.broadcasted_iota(jnp.int32, (1, n_pad), 1)
        key_bias = jnp.where(col < n_actual,
                             jnp.float32(0.0), jnp.float32(-1e30))   # (1, N_pad)
    else:
        key_bias = None

    dn_t = (((1,), (1,)), ((), ()))   # contract last dims: A @ B^T w/o transpose

    # Per-head attention (scores / softmax / p@v only; projections are fused above).
    for h in range(num_heads):        # static unroll over heads
        sl = slice(h * hd, (h + 1) * hd)
        q_h = q_buf[:, sl]                                            # (tq, hd) bf16
        k_h = k_cache[:, sl]                                          # (N_pad, hd) bf16
        v_h = v_cache[:, sl]                                          # (N_pad, hd) bf16

        s = lax.dot_general(q_h, k_h, dn_t,
                            preferred_element_type=jnp.float32)       # (tq, N_pad) f32
        if key_bias is not None:
            s = s + key_bias
        s = s - jnp.max(s, axis=-1, keepdims=True)
        p = jnp.exp(s)
        inv = pl.reciprocal(jnp.sum(p, axis=-1, keepdims=True), approx=True)  # (tq, 1)

        o_h = jnp.dot(p.astype(jnp.bfloat16), v_h,
                      preferred_element_type=jnp.float32)              # (tq, hd) f32
        # Normalize AFTER p@v (tq*hd multiplies instead of tq*N).
        attn_buf[:, sl] = (o_h * inv).astype(attn_buf.dtype)

    # --- fused output projection + bias ---
    y = jnp.dot(attn_buf[...], wp_ref[...], preferred_element_type=jnp.float32)
    y = y + b_ref[...].astype(jnp.float32)
    o_ref[0] = y.astype(o_ref.dtype)


def _pick_q_tile(n_pad: int) -> int:
    # n_pad is either < 128 (no padding) or a multiple of 128.
    # TODO(synk): allow tq=512 on 128-MiB-VMEM parts (v5e/v6e); keep <= 256 on v7x.
    for t in (256, 128):
        if n_pad % t == 0:
            return t
    return n_pad


def prepare_attention_weights(w_qkv, w_proj, b_proj, *, num_heads: int):
    """Host-side weight prep (precompute once and reuse across forward calls):
    transpose to (in, out) layout, fold the softmax scale into Wq, cast to bf16."""
    C = w_proj.shape[0]
    hd = C // num_heads
    scale = hd ** -0.5
    wq = (w_qkv[0 * C:1 * C].T * scale).astype(jnp.bfloat16)   # (C, C)
    wk = w_qkv[1 * C:2 * C].T.astype(jnp.bfloat16)             # (C, C)
    wv = w_qkv[2 * C:3 * C].T.astype(jnp.bfloat16)             # (C, C)
    wp = w_proj.T.astype(jnp.bfloat16)                         # (C, C)
    b2 = b_proj.reshape(1, C).astype(jnp.float32)
    return wq, wk, wv, wp, b2


def attention_forward(x, wq, wk, wv, wp, b2, *, num_heads: int):
    """x: (B, N, C); weights already prepared by prepare_attention_weights."""
    B, N, C = x.shape
    assert C % num_heads == 0
    x_bf = x.astype(jnp.bfloat16)

    # Pad the sequence to a multiple of 128 when needed (query pipelining and
    # (8,128) alignment). Padded keys are masked in-kernel; padded query rows are
    # sliced off below. Small N (< 128) uses the full-extent block rule directly.
    if N >= 128 and N % 128 != 0:
        n_pad = ((N + 127) // 128) * 128
        x_bf = jnp.pad(x_bf, ((0, 0), (0, n_pad - N), (0, 0)))
    else:
        n_pad = N

    tq = _pick_q_tile(n_pad)
    grid = (B, n_pad // tq)

    kernel = functools.partial(_attention_kernel, num_heads=num_heads, n_actual=N)

    # VMEM budget: double-buffered x / out blocks, weights (double-buffered by
    # default), the bf16 K/V caches and the f32 score / projection working set.
    bytes_x = n_pad * C * 2
    bytes_out = tq * C * x.dtype.itemsize
    bytes_w = 4 * C * C * 2 + C * 4
    bytes_kv = 2 * n_pad * C * 2
    bytes_slabs = 2 * tq * C * 2
    bytes_work = 2 * tq * n_pad * 4 + 6 * tq * C * 4
    vmem_bytes = (2 * (bytes_x + bytes_out) + 2 * bytes_w + bytes_kv
                  + bytes_slabs + bytes_work + (4 << 20))
    vmem_bytes = max(32 << 20, min(vmem_bytes, 64 << 20))

    out = pl.pallas_call(
        kernel,
        out_shape=jax.ShapeDtypeStruct((B, n_pad, C), x.dtype),
        grid_spec=pltpu.PrefetchScalarGridSpec(
            num_scalar_prefetch=0,
            grid=grid,
            in_specs=[
                # Full (padded) sequence; constant index along t -> fetched once per b.
                pl.BlockSpec((1, n_pad, C), lambda b, t: (b, 0, 0)),
                pl.BlockSpec((C, C), lambda b, t: (0, 0)),   # Wq (scaled)
                pl.BlockSpec((C, C), lambda b, t: (0, 0)),   # Wk
                pl.BlockSpec((C, C), lambda b, t: (0, 0)),   # Wv
                pl.BlockSpec((C, C), lambda b, t: (0, 0)),   # Wproj
                pl.BlockSpec((1, C), lambda b, t: (0, 0)),   # bias
            ],
            out_specs=pl.BlockSpec((1, tq, C), lambda b, t: (b, t, 0)),
            scratch_shapes=[
                pltpu.VMEM((n_pad, C), jnp.bfloat16),   # K cache (per batch element)
                pltpu.VMEM((n_pad, C), jnp.bfloat16),   # V cache (per batch element)
                pltpu.VMEM((tq, C), jnp.bfloat16),      # Q slab for this tile
                pltpu.VMEM((tq, C), jnp.bfloat16),      # per-head attention outputs
            ],
        ),
        compiler_params=pltpu.CompilerParams(
            # batch parallel (megacore); query-tile axis arbitrary so the K/V
            # scratch carried across t stays valid on a single TensorCore.
            dimension_semantics=("parallel", "arbitrary"),
            vmem_limit_bytes=vmem_bytes),
    )(x_bf, wq, wk, wv, wp, b2)

    return out[:, :N, :] if n_pad != N else out


def attention_pallas(x, w_qkv, w_proj, b_proj, *, num_heads: int):
    """Convenience wrapper: x (B,N,C) f32; w_qkv (3C,C), w_proj (C,C) in PyTorch
    (out,in) layout; b_proj (C,). Returns (B,N,C) in x.dtype."""
    wq, wk, wv, wp, b2 = prepare_attention_weights(
        w_qkv, w_proj, b_proj, num_heads=num_heads)
    return attention_forward(x, wq, wk, wv, wp, b2, num_heads=num_heads)


def attention_ref(x, w_qkv, w_proj, b_proj, *, num_heads: int):
    """Pure-JAX f32 reference matching the PyTorch forward (eager math path)."""
    B, N, C = x.shape
    hd = C // num_heads
    scale = hd ** -0.5
    qkv = x @ w_qkv.T                                       # (B, N, 3C)
    qkv = qkv.reshape(B, N, 3, num_heads, hd).transpose(2, 0, 3, 1, 4)
    q, k, v = qkv[0], qkv[1], qkv[2]                        # (B, H, N, hd)
    q = q * scale
    attn = jax.nn.softmax(jnp.einsum('bhqd,bhkd->bhqk', q, k), axis=-1)
    out = jnp.einsum('bhqk,bhkd->bhqd', attn, v)            # (B, H, N, hd)
    out = out.transpose(0, 2, 1, 3).reshape(B, N, C)
    return out @ w_proj.T + b_proj


if __name__ == "__main__":
    num_heads = 4
    key = jax.random.PRNGKey(0)
    kx, kqkv, kp, kb = jax.random.split(key, 4)

    # Small shapes consistent with the module: dim=32, num_heads=4 -> head_dim=8.
    B, N, C = 2, 8, 32
    x = jax.random.normal(kx, (B, N, C), dtype=jnp.float32)
    # PyTorch nn.Linear weights are (out_features, in_features); qkv_bias=False.
    w_qkv = jax.random.normal(kqkv, (3 * C, C), dtype=jnp.float32) * 0.05
    w_proj = jax.random.normal(kp, (C, C), dtype=jnp.float32) * 0.05
    b_proj = jax.random.normal(kb, (C,), dtype=jnp.float32) * 0.01

    out = attention_pallas(x, w_qkv, w_proj, b_proj, num_heads=num_heads)
    out = jax.block_until_ready(out)
    ref = attention_ref(x, w_qkv, w_proj, b_proj, num_heads=num_heads)
    assert out.shape == (B, N, C)
    max_err = jnp.max(jnp.abs(out - ref))
    # bf16 matmuls + approx reciprocal -> relaxed tolerance vs f32 reference.
    assert jnp.allclose(out, ref, atol=2e-2, rtol=2e-2), \
        f"mismatch vs reference (max|err|={max_err})"

    # Second check: non-128-divisible sequence -> padding + key mask + multiple
    # query tiles reusing the cached K/V scratch (N=400 pads to 512, tq=256).
    N2 = 400
    x2 = jax.random.normal(kx, (B, N2, C), dtype=jnp.float32)
    out2 = jax.block_until_ready(
        attention_pallas(x2, w_qkv, w_proj, b_proj, num_heads=num_heads))
    ref2 = attention_ref(x2, w_qkv, w_proj, b_proj, num_heads=num_heads)
    assert out2.shape == (B, N2, C)
    max_err2 = jnp.max(jnp.abs(out2 - ref2))
    assert jnp.allclose(out2, ref2, atol=2e-2, rtol=2e-2), \
        f"mismatch vs reference on padded path (max|err|={max_err2})"

    print("KERNEL_OK")
</pallas_src>

<mosaic_0001>
module attributes {stable_mosaic.version = 11 : i64} {
  func.func @_attention_kernel(%arg0: i32, %arg1: i32, %arg2: memref<1x8x32xbf16, #tpu.memory_space<vmem>>, %arg3: memref<32x32xbf16, #tpu.memory_space<vmem>>, %arg4: memref<32x32xbf16, #tpu.memory_space<vmem>>, %arg5: memref<32x32xbf16, #tpu.memory_space<vmem>>, %arg6: memref<32x32xbf16, #tpu.memory_space<vmem>>, %arg7: memref<1x32xf32, #tpu.memory_space<vmem>>, %arg8: memref<1x8x32xf32, #tpu.memory_space<vmem>>, %arg9: memref<8x32xbf16, #tpu.memory_space<vmem>>, %arg10: memref<8x32xbf16, #tpu.memory_space<vmem>>, %arg11: memref<8x32xbf16, #tpu.memory_space<vmem>>, %arg12: memref<8x32xbf16, #tpu.memory_space<vmem>>) attributes {dimension_semantics = [#tpu.dimension_semantics<parallel>, #tpu.dimension_semantics<arbitrary>], iteration_bounds = array<i64: 2, 1>, scalar_prefetch = 0 : i64, scratch_operands = 4 : i64, tpu.core_type = #tpu.core_type<tc>, window_params = [{transform_indices = @transform_0, window_bounds = array<i64: 1, 8, 32>}, {pipeline_mode = #tpu.pipeline_mode<synchronous>, transform_indices = @transform_1, window_bounds = array<i64: 32, 32>}, {pipeline_mode = #tpu.pipeline_mode<synchronous>, transform_indices = @transform_2, window_bounds = array<i64: 32, 32>}, {pipeline_mode = #tpu.pipeline_mode<synchronous>, transform_indices = @transform_3, window_bounds = array<i64: 32, 32>}, {pipeline_mode = #tpu.pipeline_mode<synchronous>, transform_indices = @transform_4, window_bounds = array<i64: 32, 32>}, {pipeline_mode = #tpu.pipeline_mode<synchronous>, transform_indices = @transform_5, window_bounds = array<i64: 1, 32>}, {transform_indices = @transform_6, window_bounds = array<i64: 1, 8, 32>}]} {
    %c0_i32 = arith.constant 0 : i32
    %0 = arith.cmpi eq, %arg1, %c0_i32 : i32
    %1 = arith.extui %0 : i1 to i32
    %c0_i32_0 = arith.constant 0 : i32
    %2 = arith.cmpi ne, %1, %c0_i32_0 : i32
    scf.if %2 {
      %c0_61 = arith.constant 0 : index
      %c0_62 = arith.constant 0 : index
      %c0_63 = arith.constant 0 : index
      %93 = vector.load %arg2[%c0_61, %c0_62, %c0_63] : memref<1x8x32xbf16, #tpu.memory_space<vmem>>, vector<1x8x32xbf16>
      %94 = vector.shape_cast %93 : vector<1x8x32xbf16> to vector<8x32xbf16>
      %c0_64 = arith.constant 0 : index
      %c0_65 = arith.constant 0 : index
      %95 = vector.load %arg4[%c0_64, %c0_65] : memref<32x32xbf16, #tpu.memory_space<vmem>>, vector<32x32xbf16>
      %cst_66 = arith.constant dense<0.000000e+00> : vector<8x32xf32>
      %96 = tpu.matmul %94, %95, %cst_66 {dimension_numbers = #tpu.dot_dimension_numbers<[1], [0], [0], [1], [0, 0, 1, 1], [], []>} : vector<8x32xbf16>, vector<32x32xbf16>, vector<8x32xf32> -> vector<8x32xf32>
      %97 = arith.truncf %96 : vector<8x32xf32> to vector<8x32xbf16>
      %c0_67 = arith.constant 0 : index
      %c0_68 = arith.constant 0 : index
      %98 = vector.load %arg9[%c0_67, %c0_68] : memref<8x32xbf16, #tpu.memory_space<vmem>>, vector<8x32xbf16>
      tpu.vector_store %arg9[%c0_67, %c0_68], %97 {strides = array<i32>} : memref<8x32xbf16, #tpu.memory_space<vmem>>, vector<8x32xbf16>,
      %c0_69 = arith.constant 0 : index
      %c0_70 = arith.constant 0 : index
      %99 = vector.load %arg5[%c0_69, %c0_70] : memref<32x32xbf16, #tpu.memory_space<vmem>>, vector<32x32xbf16>
      %cst_71 = arith.constant dense<0.000000e+00> : vector<8x32xf32>
      %100 = tpu.matmul %94, %99, %cst_71 {dimension_numbers = #tpu.dot_dimension_numbers<[1], [0], [0], [1], [0, 0, 1, 1], [], []>} : vector<8x32xbf16>, vector<32x32xbf16>, vector<8x32xf32> -> vector<8x32xf32>
      %101 = arith.truncf %100 : vector<8x32xf32> to vector<8x32xbf16>
      %c0_72 = arith.constant 0 : index
      %c0_73 = arith.constant 0 : index
      %102 = vector.load %arg10[%c0_72, %c0_73] : memref<8x32xbf16, #tpu.memory_space<vmem>>, vector<8x32xbf16>
      tpu.vector_store %arg10[%c0_72, %c0_73], %101 {strides = array<i32>} : memref<8x32xbf16, #tpu.memory_space<vmem>>, vector<8x32xbf16>,
    } else {
    }
    %c8_i32 = arith.constant 8 : i32
    %3 = arith.muli %arg1, %c8_i32 : i32
    %4 = tpu.assume_multiple %3, 8 : i32
    %c0 = arith.constant 0 : index
    %5 = arith.index_cast %4 : i32 to index
    %c0_1 = arith.constant 0 : index
    %6 = vector.load %arg2[%c0, %5, %c0_1] : memref<1x8x32xbf16, #tpu.memory_space<vmem>>, vector<1x8x32xbf16>
    %7 = vector.shape_cast %6 : vector<1x8x32xbf16> to vector<8x32xbf16>
    %c0_2 = arith.constant 0 : index
    %c0_3 = arith.constant 0 : index
    %8 = vector.load %arg3[%c0_2, %c0_3] : memref<32x32xbf16, #tpu.memory_space<vmem>>, vector<32x32xbf16>
    %cst = arith.constant dense<0.000000e+00> : vector<8x32xf32>
    %9 = tpu.matmul %7, %8, %cst {dimension_numbers = #tpu.dot_dimension_numbers<[1], [0], [0], [1], [0, 0, 1, 1], [], []>} : vector<8x32xbf16>, vector<32x32xbf16>, vector<8x32xf32> -> vector<8x32xf32>
    %10 = arith.truncf %9 : vector<8x32xf32> to vector<8x32xbf16>
    %c0_4 = arith.constant 0 : index
    %c0_5 = arith.constant 0 : index
    %11 = vector.load %arg11[%c0_4, %c0_5] : memref<8x32xbf16, #tpu.memory_space<vmem>>, vector<8x32xbf16>
    tpu.vector_store %arg11[%c0_4, %c0_5], %10 {strides = array<i32>} : memref<8x32xbf16, #tpu.memory_space<vmem>>, vector<8x32xbf16>,
    %c0_6 = arith.constant 0 : index
    %c0_7 = arith.constant 0 : index
    %12 = vector.load %arg11[%c0_6, %c0_7] : memref<8x32xbf16, #tpu.memory_space<vmem>>, vector<8x8xbf16>
    %c0_8 = arith.constant 0 : index
    %c0_9 = arith.constant 0 : index
    %13 = vector.load %arg9[%c0_8, %c0_9] : memref<8x32xbf16, #tpu.memory_space<vmem>>, vector<8x8xbf16>
    %c0_10 = arith.constant 0 : index
    %c0_11 = arith.constant 0 : index
    %14 = vector.load %arg10[%c0_10, %c0_11] : memref<8x32xbf16, #tpu.memory_space<vmem>>, vector<8x8xbf16>
    %cst_12 = arith.constant dense<0.000000e+00> : vector<8x8xf32>
    %15 = tpu.matmul %12, %13, %cst_12 {dimension_numbers = #tpu.dot_dimension_numbers<[1], [1], [0], [0], [0, 0, 1, 0], [], []>} : vector<8x8xbf16>, vector<8x8xbf16>, vector<8x8xf32> -> vector<8x8xf32>
    %cst_13 = arith.constant dense<0xFF800000> : vector<8xf32>
    %16 = vector.multi_reduction <maximumf>, %15, %cst_13 [1] : vector<8x8xf32> to vector<8xf32>
    %17 = vector.shape_cast %16 : vector<8xf32> to vector<8x1xf32>
    %18 = vector.broadcast %17 : vector<8x1xf32> to vector<8x8xf32>
    %19 = arith.subf %15, %18 : vector<8x8xf32>
    %20 = math.exp %19 : vector<8x8xf32>
    %cst_14 = arith.constant dense<0.000000e+00> : vector<8xf32>
    %21 = vector.multi_reduction <add>, %20, %cst_14 [1] : vector<8x8xf32> to vector<8xf32>
    %22 = vector.shape_cast %21 : vector<8xf32> to vector<8x1xf32>
    %23 = tpu.reciprocal %22 {approx = true} : vector<8x1xf32> -> vector<8x1xf32>
    %24 = arith.truncf %20 : vector<8x8xf32> to vector<8x8xbf16>
    %cst_15 = arith.constant dense<0.000000e+00> : vector<8x8xf32>
    %25 = tpu.matmul %24, %14, %cst_15 {dimension_numbers = #tpu.dot_dimension_numbers<[1], [0], [0], [1], [0, 0, 1, 1], [], []>} : vector<8x8xbf16>, vector<8x8xbf16>, vector<8x8xf32> -> vector<8x8xf32>
    %26 = vector.broadcast %23 : vector<8x1xf32> to vector<8x8xf32>
    %27 = arith.mulf %25, %26 : vector<8x8xf32>
    %28 = arith.truncf %27 : vector<8x8xf32> to vector<8x8xbf16>
    %c0_16 = arith.constant 0 : index
    %c0_17 = arith.constant 0 : index
    %29 = vector.load %arg12[%c0_16, %c0_17] : memref<8x32xbf16, #tpu.memory_space<vmem>>, vector<8x8xbf16>
    tpu.vector_store %arg12[%c0_16, %c0_17], %28 {strides = array<i32>} : memref<8x32xbf16, #tpu.memory_space<vmem>>, vector<8x8xbf16>,
    %c0_18 = arith.constant 0 : index
    %c8 = arith.constant 8 : index
    %30 = vector.load %arg11[%c0_18, %c8] : memref<8x32xbf16, #tpu.memory_space<vmem>>, vector<8x8xbf16>
    %c0_19 = arith.constant 0 : index
    %c8_20 = arith.constant 8 : index
    %31 = vector.load %arg9[%c0_19, %c8_20] : memref<8x32xbf16, #tpu.memory_space<vmem>>, vector<8x8xbf16>
    %c0_21 = arith.constant 0 : index
    %c8_22 = arith.constant 8 : index
    %32 = vector.load %arg10[%c0_21, %c8_22] : memref<8x32xbf16, #tpu.memory_space<vmem>>, vector<8x8xbf16>
    %cst_23 = arith.constant dense<0.000000e+00> : vector<8x8xf32>
    %33 = tpu.matmul %30, %31, %cst_23 {dimension_numbers = #tpu.dot_dimension_numbers<[1], [1], [0], [0], [0, 0, 1, 0], [], []>} : vector<8x8xbf16>, vector<8x8xbf16>, vector<8x8xf32> -> vector<8x8xf32>
    %cst_24 = arith.constant dense<0xFF800000> : vector<8xf32>
    %34 = vector.multi_reduction <maximumf>, %33, %cst_24 [1] : vector<8x8xf32> to vector<8xf32>
    %35 = vector.shape_cast %34 : vector<8xf32> to vector<8x1xf32>
    %36 = vector.broadcast %35 : vector<8x1xf32> to vector<8x8xf32>
    %37 = arith.subf %33, %36 : vector<8x8xf32>
    %38 = math.exp %37 : vector<8x8xf32>
    %cst_25 = arith.constant dense<0.000000e+00> : vector<8xf32>
    %39 = vector.multi_reduction <add>, %38, %cst_25 [1] : vector<8x8xf32> to vector<8xf32>
    %40 = vector.shape_cast %39 : vector<8xf32> to vector<8x1xf32>
    %41 = tpu.reciprocal %40 {approx = true} : vector<8x1xf32> -> vector<8x1xf32>
    %42 = arith.truncf %38 : vector<8x8xf32> to vector<8x8xbf16>
    %cst_26 = arith.constant dense<0.000000e+00> : vector<8x8xf32>
    %43 = tpu.matmul %42, %32, %cst_26 {dimension_numbers = #tpu.dot_dimension_numbers<[1], [0], [0], [1], [0, 0, 1, 1], [], []>} : vector<8x8xbf16>, vector<8x8xbf16>, vector<8x8xf32> -> vector<8x8xf32>
    %44 = vector.broadcast %41 : vector<8x1xf32> to vector<8x8xf32>
    %45 = arith.mulf %43, %44 : vector<8x8xf32>
    %46 = arith.truncf %45 : vector<8x8xf32> to vector<8x8xbf16>
    %c0_27 = arith.constant 0 : index
    %c8_28 = arith.constant 8 : index
    %47 = vector.load %arg12[%c0_27, %c8_28] : memref<8x32xbf16, #tpu.memory_space<vmem>>, vector<8x8xbf16>
    tpu.vector_store %arg12[%c0_27, %c8_28], %46 {strides = array<i32>} : memref<8x32xbf16, #tpu.memory_space<vmem>>, vector<8x8xbf16>,
    %c0_29 = arith.constant 0 : index
    %c16 = arith.constant 16 : index
    %48 = vector.load %arg11[%c0_29, %c16] : memref<8x32xbf16, #tpu.memory_space<vmem>>, vector<8x8xbf16>
    %c0_30 = arith.constant 0 : index
    %c16_31 = arith.constant 16 : index
    %49 = vector.load %arg9[%c0_30, %c16_31] : memref<8x32xbf16, #tpu.memory_space<vmem>>, vector<8x8xbf16>
    %c0_32 = arith.constant 0 : index
    %c16_33 = arith.constant 16 : index
    %50 = vector.load %arg10[%c0_32, %c16_33] : memref<8x32xbf16, #tpu.memory_space<vmem>>, vector<8x8xbf16>
    %cst_34 = arith.constant dense<0.000000e+00> : vector<8x8xf32>
    %51 = tpu.matmul %48, %49, %cst_34 {dimension_numbers = #tpu.dot_dimension_numbers<[1], [1], [0], [0], [0, 0, 1, 0], [], []>} : vector<8x8xbf16>, vector<8x8xbf16>, vector<8x8xf32> -> vector<8x8xf32>
    %cst_35 = arith.constant dense<0xFF800000> : vector<8xf32>
    %52 = vector.multi_reduction <maximumf>, %51, %cst_35 [1] : vector<8x8xf32> to vector<8xf32>
    %53 = vector.shape_cast %52 : vector<8xf32> to vector<8x1xf32>
    %54 = vector.broadcast %53 : vector<8x1xf32> to vector<8x8xf32>
    %55 = arith.subf %51, %54 : vector<8x8xf32>
    %56 = math.exp %55 : vector<8x8xf32>
    %cst_36 = arith.constant dense<0.000000e+00> : vector<8xf32>
    %57 = vector.multi_reduction <add>, %56, %cst_36 [1] : vector<8x8xf32> to vector<8xf32>
    %58 = vector.shape_cast %57 : vector<8xf32> to vector<8x1xf32>
    %59 = tpu.reciprocal %58 {approx = true} : vector<8x1xf32> -> vector<8x1xf32>
    %60 = arith.truncf %56 : vector<8x8xf32> to vector<8x8xbf16>
    %cst_37 = arith.constant dense<0.000000e+00> : vector<8x8xf32>
    %61 = tpu.matmul %60, %50, %cst_37 {dimension_numbers = #tpu.dot_dimension_numbers<[1], [0], [0], [1], [0, 0, 1, 1], [], []>} : vector<8x8xbf16>, vector<8x8xbf16>, vector<8x8xf32> -> vector<8x8xf32>
    %62 = vector.broadcast %59 : vector<8x1xf32> to vector<8x8xf32>
    %63 = arith.mulf %61, %62 : vector<8x8xf32>
    %64 = arith.truncf %63 : vector<8x8xf32> to vector<8x8xbf16>
    %c0_38 = arith.constant 0 : index
    %c16_39 = arith.constant 16 : index
    %65 = vector.load %arg12[%c0_38, %c16_39] : memref<8x32xbf16, #tpu.memory_space<vmem>>, vector<8x8xbf16>
    tpu.vector_store %arg12[%c0_38, %c16_39], %64 {strides = array<i32>} : memref<8x32xbf16, #tpu.memory_space<vmem>>, vector<8x8xbf16>,
    %c0_40 = arith.constant 0 : index
    %c24 = arith.constant 24 : index
    %66 = vector.load %arg11[%c0_40, %c24] : memref<8x32xbf16, #tpu.memory_space<vmem>>, vector<8x8xbf16>
    %c0_41 = arith.constant 0 : index
    %c24_42 = arith.constant 24 : index
    %67 = vector.load %arg9[%c0_41, %c24_42] : memref<8x32xbf16, #tpu.memory_space<vmem>>, vector<8x8xbf16>
    %c0_43 = arith.constant 0 : index
    %c24_44 = arith.constant 24 : index
    %68 = vector.load %arg10[%c0_43, %c24_44] : memref<8x32xbf16, #tpu.memory_space<vmem>>, vector<8x8xbf16>
    %cst_45 = arith.constant dense<0.000000e+00> : vector<8x8xf32>
    %69 = tpu.matmul %66, %67, %cst_45 {dimension_numbers = #tpu.dot_dimension_numbers<[1], [1], [0], [0], [0, 0, 1, 0], [], []>} : vector<8x8xbf16>, vector<8x8xbf16>, vector<8x8xf32> -> vector<8x8xf32>
    %cst_46 = arith.constant dense<0xFF800000> : vector<8xf32>
    %70 = vector.multi_reduction <maximumf>, %69, %cst_46 [1] : vector<8x8xf32> to vector<8xf32>
    %71 = vector.shape_cast %70 : vector<8xf32> to vector<8x1xf32>
    %72 = vector.broadcast %71 : vector<8x1xf32> to vector<8x8xf32>
    %73 = arith.subf %69, %72 : vector<8x8xf32>
    %74 = math.exp %73 : vector<8x8xf32>
    %cst_47 = arith.constant dense<0.000000e+00> : vector<8xf32>
    %75 = vector.multi_reduction <add>, %74, %cst_47 [1] : vector<8x8xf32> to vector<8xf32>
    %76 = vector.shape_cast %75 : vector<8xf32> to vector<8x1xf32>
    %77 = tpu.reciprocal %76 {approx = true} : vector<8x1xf32> -> vector<8x1xf32>
    %78 = arith.truncf %74 : vector<8x8xf32> to vector<8x8xbf16>
    %cst_48 = arith.constant dense<0.000000e+00> : vector<8x8xf32>
    %79 = tpu.matmul %78, %68, %cst_48 {dimension_numbers = #tpu.dot_dimension_numbers<[1], [0], [0], [1], [0, 0, 1, 1], [], []>} : vector<8x8xbf16>, vector<8x8xbf16>, vector<8x8xf32> -> vector<8x8xf32>
    %80 = vector.broadcast %77 : vector<8x1xf32> to vector<8x8xf32>
    %81 = arith.mulf %79, %80 : vector<8x8xf32>
    %82 = arith.truncf %81 : vector<8x8xf32> to vector<8x8xbf16>
    %c0_49 = arith.constant 0 : index
    %c24_50 = arith.constant 24 : index
    %83 = vector.load %arg12[%c0_49, %c24_50] : memref<8x32xbf16, #tpu.memory_space<vmem>>, vector<8x8xbf16>
    tpu.vector_store %arg12[%c0_49, %c24_50], %82 {strides = array<i32>} : memref<8x32xbf16, #tpu.memory_space<vmem>>, vector<8x8xbf16>,
    %c0_51 = arith.constant 0 : index
    %c0_52 = arith.constant 0 : index
    %84 = vector.load %arg12[%c0_51, %c0_52] : memref<8x32xbf16, #tpu.memory_space<vmem>>, vector<8x32xbf16>
    %c0_53 = arith.constant 0 : index
    %c0_54 = arith.constant 0 : index
    %85 = vector.load %arg6[%c0_53, %c0_54] : memref<32x32xbf16, #tpu.memory_space<vmem>>, vector<32x32xbf16>
    %cst_55 = arith.constant dense<0.000000e+00> : vector<8x32xf32>
    %86 = tpu.matmul %84, %85, %cst_55 {dimension_numbers = #tpu.dot_dimension_numbers<[1], [0], [0], [1], [0, 0, 1, 1], [], []>} : vector<8x32xbf16>, vector<32x32xbf16>, vector<8x32xf32> -> vector<8x32xf32>
    %c0_56 = arith.constant 0 : index
    %c0_57 = arith.constant 0 : index
    %87 = vector.load %arg7[%c0_56, %c0_57] : memref<1x32xf32, #tpu.memory_space<vmem>>, vector<1x32xf32>
    %88 = vector.broadcast %87 : vector<1x32xf32> to vector<8x32xf32>
    %89 = arith.addf %86, %88 : vector<8x32xf32>
    %c0_58 = arith.constant 0 : index
    %c0_59 = arith.constant 0 : index
    %c0_60 = arith.constant 0 : index
    %90 = vector.load %arg8[%c0_58, %c0_59, %c0_60] : memref<1x8x32xf32, #tpu.memory_space<vmem>>, vector<1x8x32xf32>
    %91 = vector.shape_cast %90 : vector<1x8x32xf32> to vector<8x32xf32>
    %92 = vector.shape_cast %89 : vector<8x32xf32> to vector<1x8x32xf32>
    tpu.vector_store %arg8[%c0_58, %c0_59, %c0_60], %92 {strides = array<i32>} : memref<1x8x32xf32, #tpu.memory_space<vmem>>, vector<1x8x32xf32>,
    return
  }
  func.func @transform_0(%arg0: i32, %arg1: i32) -> (i32, i32, i32) {
    %c0_i32 = arith.constant 0 : i32
    %c0_i32_0 = arith.constant 0 : i32
    %c0_i32_1 = arith.constant 0 : i32
    return %arg0, %c0_i32, %c0_i32_0 : i32, i32, i32
  }
  func.func @transform_1(%arg0: i32, %arg1: i32) -> (i32, i32) {
    %c0_i32 = arith.constant 0 : i32
    %c0_i32_0 = arith.constant 0 : i32
    %c0_i32_1 = arith.constant 0 : i32
    return %c0_i32, %c0_i32_0 : i32, i32
  }
  func.func @transform_2(%arg0: i32, %arg1: i32) -> (i32, i32) {
    %c0_i32 = arith.constant 0 : i32
    %c0_i32_0 = arith.constant 0 : i32
    %c0_i32_1 = arith.constant 0 : i32
    return %c0_i32, %c0_i32_0 : i32, i32
  }
  func.func @transform_3(%arg0: i32, %arg1: i32) -> (i32, i32) {
    %c0_i32 = arith.constant 0 : i32
    %c0_i32_0 = arith.constant 0 : i32
    %c0_i32_1 = arith.constant 0 : i32
    return %c0_i32, %c0_i32_0 : i32, i32
  }
  func.func @transform_4(%arg0: i32, %arg1: i32) -> (i32, i32) {
    %c0_i32 = arith.constant 0 : i32
    %c0_i32_0 = arith.constant 0 : i32
    %c0_i32_1 = arith.constant 0 : i32
    return %c0_i32, %c0_i32_0 : i32, i32
  }
  func.func @transform_5(%arg0: i32, %arg1: i32) -> (i32, i32) {
    %c0_i32 = arith.constant 0 : i32
    %c0_i32_0 = arith.constant 0 : i32
    %c0_i32_1 = arith.constant 0 : i32
    return %c0_i32, %c0_i32_0 : i32, i32
  }
  func.func @transform_6(%arg0: i32, %arg1: i32) -> (i32, i32, i32) {
    %c0_i32 = arith.constant 0 : i32
    %c0_i32_0 = arith.constant 0 : i32
    return %arg0, %arg1, %c0_i32 : i32, i32, i32
  }
}

</mosaic_0001>

<llo_original>
// kernel: tpu_custom_call.1
$region0: #{tpu_custom_call.1}
  #allocation0 [shape = 'u32[]', space=smem, size = 0x4, offset = 0x4, fixed_abs, tag = 'smem constant byte address 0x4 - core index']
  #allocation1 [shape = 'u32[144,128]{1,0:T(1,128)}', space=vmem, size = 0x12000, scoped, tag = 'internal scratch']
  #allocation2 [shape = 'bf16[8,32]{1,0:T(8,128)(2,1)}', space=vmem, size = 0x800, scoped, tag = 'scratch operand']
  #allocation3 [shape = 'bf16[8,32]{1,0:T(8,128)(2,1)}', space=vmem, size = 0x800, scoped, tag = 'scratch operand']
  #allocation4 [shape = 'bf16[8,32]{1,0:T(8,128)(2,1)}', space=vmem, size = 0x800, scoped, tag = 'scratch operand']
  #allocation5 [shape = 'bf16[8,32]{1,0:T(8,128)(2,1)}', space=vmem, size = 0x800, scoped, tag = 'scratch operand']
  %s0 = inlined_call_operand.hbm [shape: bf16[2,8,32], index: 0, kind: input, shape index: {}]
  %s1 = inlined_call_operand.hbm [shape: bf16[32,32], index: 1, kind: input, shape index: {}]
  %s2 = inlined_call_operand.hbm [shape: bf16[32,32], index: 2, kind: input, shape index: {}]
  %s3 = inlined_call_operand.hbm [shape: bf16[32,32], index: 3, kind: input, shape index: {}]
  %s4 = inlined_call_operand.hbm [shape: bf16[32,32], index: 4, kind: input, shape index: {}]
  %s5 = inlined_call_operand.vmem [shape: f32[1,32], index: 5, kind: input, shape index: {}]
  %s6 = inlined_call_operand.hbm [shape: f32[2,8,32], index: 6, kind: output, shape index: {}]
  %s7 = sld [smem:[#allocation0]]
  $region81: #{tpu_custom_call.1} parent=0
    _
  %s9 = ssub.s32 1, %s7
  %s10 = scalar_select 0, %s9, %s7
  $region1: #{tpu_custom_call.1} parent=0
    #allocation6 [shape = 'u8[4096]{0}', space=vmem, size = 0x1000, scoped, tag = 'input window, operand 0']
    #allocation7 [shape = 's32[2]{0}', space=sflag, size = 0x8, scoped, tag = 'scoped memory for tpu_custom_call.1']
    #allocation8 [shape = 's32[2]{0}', space=sflag, size = 0x8, scoped, tag = 'scoped memory for tpu_custom_call.1']
    #allocation9 [shape = 'u8[8192]{0}', space=vmem, size = 0x2000, scoped, tag = 'input window, operand 1, single buffered']
    #allocation10 [shape = 's32[1]{0}', space=sflag, size = 0x4, scoped, tag = 'scoped memory for tpu_custom_call.1']
    #allocation11 [shape = 'u8[8192]{0}', space=vmem, size = 0x2000, scoped, tag = 'input window, operand 2, single buffered']
    #allocation12 [shape = 'u8[8192]{0}', space=vmem, size = 0x2000, scoped, tag = 'input window, operand 3, single buffered']
    #allocation13 [shape = 's32[1]{0}', space=sflag, size = 0x4, scoped, tag = 'scoped memory for tpu_custom_call.1']
    #allocation14 [shape = 'u8[8192]{0}', space=vmem, size = 0x2000, scoped, tag = 'input window, operand 4, single buffered']
    #allocation15 [shape = 'u8[8192]{0}', space=vmem, size = 0x2000, scoped, tag = 'output window, operand 0']
    %11 = vsyncpa [#allocation7], 0
    %s12 = scalar_lea.sflag [#allocation7], 1
    %13 = vsyncpa %s12, 0
    %14 = vsyncpa [#allocation10], 0
    %15 = vsyncpa [#allocation13], 0
    %16 = vsyncpa [#allocation8], 0
    %s17 = scalar_lea.sflag [#allocation8], 1
    %18 = vsyncpa %s17, 0
    loop: start=0, step=1, limit=4
    $region2: #{tpu_custom_call.1} parent=1 // loop_pre_header
      _
    $region3: #{tpu_custom_call.1} parent=1 // loop_header
      %s20 = sphi 0, %s24
      %p21 = scmp.ge.s32.totalorder %s20, 4
      %s27 = sphi 0, %s39
      %s28 = sphi 0, %s35
      %s29 = sphi 0, %s27
      %s30 = sphi 0, %s28
      %s31 = sphi 0, %s29
      %s32 = sphi 0, %s30
      %s42 = sphi 0, %s44
      %s45 = sphi 0, %s42
      %s46 = sphi 0, %s45
      %s62 = sphi 0, %s46
      %s66 = sphi 0, %s66
      %s68 = sphi 0, %s66
      %s69 = sphi 0, %s68
      %s83 = sphi 0, %s69
      %s87 = sphi 0, %s87
      %s89 = sphi 0, %s87
      %s90 = sphi 0, %s89
      %s104 = sphi 0, %s90
      %s108 = sphi 0, %s108
      %s110 = sphi 0, %s108
      %s111 = sphi 0, %s110
      %s125 = sphi 0, %s111
      %s129 = sphi 0, %s129
      %s131 = sphi 0, %s129
      %s132 = sphi 0, %s131
      %s146 = sphi 0, %s132
      %s150 = sphi 0, %s150
      %s152 = sphi 0, %s150
      %s153 = sphi 0, %s152
      %s167 = sphi 0, %s153
      %s175 = sphi 0, %s177
      %s178 = sphi 0, %s175
      %s179 = sphi 0, %s178
      %s195 = sphi 0, %s179
    $region4: #{tpu_custom_call.1} parent=1 // loop_header_branch
      %23 = sbr.rel (%p21) target = $region8
    $region5: #{tpu_custom_call.1} parent=1 // loop_body
      %s25 = ssub.s32 %s20, 1
      %s26 = ssub.s32 %s20, 2
      %s33 = sadd.s32 1, %s28
      %p34 = scmp.ge.s32.totalorder %s33, 1
      %s35 = scalar_select %p34, 0, %s33
      %s36 = sadd.s32 1, %s27
      %s37 = scalar_select %p34, %s36, %s27
      %p38 = scmp.ge.s32.totalorder %s37, 2
      %s39 = scalar_select %p38, 0, %s37
      %s40 = ssub.s32 %s27, %s39
      %p41 = scmp.eq.s32.totalorder %s40, 0
      %s43 = sadd.s32 %s42, 1
      %s44 = scalar_select %p41, %s42, %s43
      %p47 = pneg %p41
      %p48 = scmp.eq.s32.totalorder %s20, 1
      %p49 = por %p47, %p48
      %p50 = scmp.ne.s32.totalorder %s42, %s45
      %p51 = scmp.eq.s32.totalorder %s20, 0
      %p52 = por %p50, %p51
      %p53 = scmp.ne.s32.totalorder %s42, %s45
      %p54 = scmp.eq.s32.totalorder %s25, 1
      %p55 = por %p53, %p54
      %p56 = scmp.ne.s32.totalorder %s45, %s46
      %p57 = scmp.eq.s32.totalorder %s25, 0
      %p58 = por %p56, %p57
      %p59 = scmp.ne.s32.totalorder %s45, %s46
      %p60 = scmp.eq.s32.totalorder %s26, 1
      %p61 = por %p59, %p60
      %p63 = scmp.ne.s32.totalorder %s46, %s62
      %p64 = scmp.eq.s32.totalorder %s26, 0
      %p65 = por %p63, %p64
      %s67 = sadd.s32 %s66, 1
      %p70 = scmp.eq.s32.totalorder %s20, 1
      %p71 = scmp.ne.s32.totalorder %s66, %s68
      %p72 = scmp.eq.s32.totalorder %s20, 0
      %p73 = por %p71, %p72
      %p74 = scmp.ne.s32.totalorder %s66, %s68
      %p75 = scmp.eq.s32.totalorder %s25, 1
      %p76 = por %p74, %p75
      %p77 = scmp.ne.s32.totalorder %s68, %s69
      %p78 = scmp.eq.s32.totalorder %s25, 0
      %p79 = por %p77, %p78
      %p80 = scmp.ne.s32.totalorder %s68, %s69
      %p81 = scmp.eq.s32.totalorder %s26, 1
      %p82 = por %p80, %p81
      %p84 = scmp.ne.s32.totalorder %s69, %s83
      %p85 = scmp.eq.s32.totalorder %s26, 0
      %p86 = por %p84, %p85
      %s88 = sadd.s32 %s87, 1
      %p91 = scmp.eq.s32.totalorder %s20, 1
      %p92 = scmp.ne.s32.totalorder %s87, %s89
      %p93 = scmp.eq.s32.totalorder %s20, 0
      %p94 = por %p92, %p93
      %p95 = scmp.ne.s32.totalorder %s87, %s89
      %p96 = scmp.eq.s32.totalorder %s25, 1
      %p97 = por %p95, %p96
      %p98 = scmp.ne.s32.totalorder %s89, %s90
      %p99 = scmp.eq.s32.totalorder %s25, 0
      %p100 = por %p98, %p99
      %p101 = scmp.ne.s32.totalorder %s89, %s90
      %p102 = scmp.eq.s32.totalorder %s26, 1
      %p103 = por %p101, %p102
      %p105 = scmp.ne.s32.totalorder %s90, %s104
      %p106 = scmp.eq.s32.totalorder %s26, 0
      %p107 = por %p105, %p106
      %s109 = sadd.s32 %s108, 1
      %p112 = scmp.eq.s32.totalorder %s20, 1
      %p113 = scmp.ne.s32.totalorder %s108, %s110
      %p114 = scmp.eq.s32.totalorder %s20, 0
      %p115 = por %p113, %p114
      %p116 = scmp.ne.s32.totalorder %s108, %s110
      %p117 = scmp.eq.s32.totalorder %s25, 1
      %p118 = por %p116, %p117
      %p119 = scmp.ne.s32.totalorder %s110, %s111
      %p120 = scmp.eq.s32.totalorder %s25, 0
      %p121 = por %p119, %p120
      %p122 = scmp.ne.s32.totalorder %s110, %s111
      %p123 = scmp.eq.s32.totalorder %s26, 1
      %p124 = por %p122, %p123
      %p126 = scmp.ne.s32.totalorder %s111, %s125
      %p127 = scmp.eq.s32.totalorder %s26, 0
      %p128 = por %p126, %p127
      %s130 = sadd.s32 %s129, 1
      %p133 = scmp.eq.s32.totalorder %s20, 1
      %p134 = scmp.ne.s32.totalorder %s129, %s131
      %p135 = scmp.eq.s32.totalorder %s20, 0
      %p136 = por %p134, %p135
      %p137 = scmp.ne.s32.totalorder %s129, %s131
      %p138 = scmp.eq.s32.totalorder %s25, 1
      %p139 = por %p137, %p138
      %p140 = scmp.ne.s32.totalorder %s131, %s132
      %p141 = scmp.eq.s32.totalorder %s25, 0
      %p142 = por %p140, %p141
      %p143 = scmp.ne.s32.totalorder %s131, %s132
      %p144 = scmp.eq.s32.totalorder %s26, 1
      %p145 = por %p143, %p144
      %p147 = scmp.ne.s32.totalorder %s132, %s146
      %p148 = scmp.eq.s32.totalorder %s26, 0
      %p149 = por %p147, %p148
      %s151 = sadd.s32 %s150, 1
      %p154 = scmp.eq.s32.totalorder %s20, 1
      %p155 = scmp.ne.s32.totalorder %s150, %s152
      %p156 = scmp.eq.s32.totalorder %s20, 0
      %p157 = por %p155, %p156
      %p158 = scmp.ne.s32.totalorder %s150, %s152
      %p159 = scmp.eq.s32.totalorder %s25, 1
      %p160 = por %p158, %p159
      %p161 = scmp.ne.s32.totalorder %s152, %s153
      %p162 = scmp.eq.s32.totalorder %s25, 0
      %p163 = por %p161, %p162
      %p164 = scmp.ne.s32.totalorder %s152, %s153
      %p165 = scmp.eq.s32.totalorder %s26, 1
      %p166 = por %p164, %p165
      %p168 = scmp.ne.s32.totalorder %s153, %s167
      %p169 = scmp.eq.s32.totalorder %s26, 0
      %p170 = por %p168, %p169
      %s171 = ssub.s32 %s27, %s39
      %s172 = ssub.s32 %s28, %s35
      %s173 = sor.u32 %s171, %s172
      %p174 = scmp.eq.s32.totalorder %s173, 0
      %s176 = sadd.s32 %s175, 1
      %s177 = scalar_select %p174, %s175, %s176
      %p180 = pneg %p174
      %p181 = scmp.eq.s32.totalorder %s20, 1
      %p182 = por %p180, %p181
      %p183 = scmp.ne.s32.totalorder %s175, %s178
      %p184 = scmp.eq.s32.totalorder %s20, 0
      %p185 = por %p183, %p184
      %p186 = scmp.ne.s32.totalorder %s175, %s178
      %p187 = scmp.eq.s32.totalorder %s25, 1
      %p188 = por %p186, %p187
      %p189 = scmp.ne.s32.totalorder %s178, %s179
      %p190 = scmp.eq.s32.totalorder %s25, 0
      %p191 = por %p189, %p190
      %p192 = scmp.ne.s32.totalorder %s178, %s179
      %p193 = scmp.eq.s32.totalorder %s26, 1
      %p194 = por %p192, %p193
      %p196 = scmp.ne.s32.totalorder %s179, %s195
      %p197 = scmp.eq.s32.totalorder %s26, 0
      %p198 = por %p196, %p197
      %p199 = scmp.le.s32.totalorder 1, %s20
      %p200 = scmp.lt.s32.totalorder %s20, 3
      %p201 = pnand %p199, %p200
      %p202 = pneg %p201
      // Predicated region
      $region9: #{tpu_custom_call.1} parent=5 // pred_check
        _
      $region10: #{tpu_custom_call.1} parent=5 // pred_check_branch
        %204 = sbr.rel (%p201) target = $region12
      $region11: #{tpu_custom_call.1} parent=5 // pred_region
        %s205 = ssub.s32 %s20, 1
        // Predicated region
        $region13: #{tpu_custom_call.1} parent=11 // pred_check
          %p206 = pneg %p79
        $region14: #{tpu_custom_call.1} parent=11 // pred_check_branch
          %208 = sbr.rel (%p206) target = $region16
        $region15: #{tpu_custom_call.1} parent=11 // pred_region
          %s210 = ssub.s32 256, 256
          %211 = vsyncadd [#allocation10], %s210
          %s212 = sshll.u32 [#allocation9], 4
          %s213 = int_to_ptr.vmem [resolvable:$true] %s212
          %218 = dma.hbm_to_vmem [thread:$0]  %s1, 256, %s213, [#allocation10], 64, 64, 4
        $region16: #{tpu_custom_call.1} parent=11 // pred_fallthru
          _
        // Predicated region
        $region17: #{tpu_custom_call.1} parent=11 // pred_check
          %p219 = pneg %p100
        $region18: #{tpu_custom_call.1} parent=11 // pred_check_branch
          %221 = sbr.rel (%p219) target = $region20
        $region19: #{tpu_custom_call.1} parent=11 // pred_region
          %s223 = ssub.s32 256, 256
          %224 = vsyncadd [#allocation10], %s223
          %s225 = sshll.u32 [#allocation11], 4
          %s226 = int_to_ptr.vmem [resolvable:$true] %s225
          %231 = dma.hbm_to_vmem [thread:$0]  %s2, 256, %s226, [#allocation10], 64, 64, 4
        $region20: #{tpu_custom_call.1} parent=11 // pred_fallthru
          _
        // Predicated region
        $region21: #{tpu_custom_call.1} parent=11 // pred_check
          %p232 = pneg %p121
        $region22: #{tpu_custom_call.1} parent=11 // pred_check_branch
          %234 = sbr.rel (%p232) target = $region24
        $region23: #{tpu_custom_call.1} parent=11 // pred_region
          %s236 = ssub.s32 256, 256
          %237 = vsyncadd [#allocation13], %s236
          %s238 = sshll.u32 [#allocation12], 4
          %s239 = int_to_ptr.vmem [resolvable:$true] %s238
          %244 = dma.hbm_to_vmem [thread:$0]  %s3, 256, %s239, [#allocation13], 64, 64, 4
        $region24: #{tpu_custom_call.1} parent=11 // pred_fallthru
          _
        // Predicated region
        $region25: #{tpu_custom_call.1} parent=11 // pred_check
          %p245 = pneg %p142
        $region26: #{tpu_custom_call.1} parent=11 // pred_check_branch
          %247 = sbr.rel (%p245) target = $region28
        $region27: #{tpu_custom_call.1} parent=11 // pred_region
          %s249 = ssub.s32 256, 256
          %250 = vsyncadd [#allocation13], %s249
          %s251 = sshll.u32 [#allocation14], 4
          %s252 = int_to_ptr.vmem [resolvable:$true] %s251
          %257 = dma.hbm_to_vmem [thread:$0]  %s4, 256, %s252, [#allocation13], 64, 64, 4
        $region28: #{tpu_custom_call.1} parent=11 // pred_fallthru
          _
        // Predicated region
        $region29: #{tpu_custom_call.1} parent=11 // pred_check
          %p258 = pneg %p163
        $region30: #{tpu_custom_call.1} parent=11 // pred_check_branch
          %260 = sbr.rel (%p258) target = $region32
        $region31: #{tpu_custom_call.1} parent=11 // pred_region
          _
        $region32: #{tpu_custom_call.1} parent=11 // pred_fallthru
          _
      $region12: #{tpu_custom_call.1} parent=5 // pred_fallthru
        _
      %p261 = scmp.lt.s32.totalorder %s20, 2
      // Predicated region
      $region33: #{tpu_custom_call.1} parent=5 // pred_check
        %p262 = pneg %p261
      $region34: #{tpu_custom_call.1} parent=5 // pred_check_branch
        %264 = sbr.rel (%p262) target = $region36
      $region35: #{tpu_custom_call.1} parent=5 // pred_region
        // Predicated region
        $region37: #{tpu_custom_call.1} parent=35 // pred_check
          %p265 = pneg %p52
        $region38: #{tpu_custom_call.1} parent=35 // pred_check_branch
          %267 = sbr.rel (%p265) target = $region40
        $region39: #{tpu_custom_call.1} parent=35 // pred_region
          %s268 = sand.u32 %s42, 1
          %s269 = scalar_lea.sflag [#allocation7], %s268
          %s270 = sand.u32 %s42, 1
          %s271 = smul.addr %s270, 4
          %s272 = scalar_lea.vmem [#allocation6], %s271
          %s274 = ssub.s32 64, 64
          %275 = vsyncadd %s269, %s274
          %s276 = smul.addr %s27, 64
          %s277 = scalar_lea.hbm %s0, %s276
          %s279 = sshll.u32 %s272, 4
          %s280 = int_to_ptr.vmem [resolvable:$true] %s279
          %282 = dma.hbm_to_vmem [thread:$0]  %s277, 64, %s280, %s269
        $region40: #{tpu_custom_call.1} parent=35 // pred_fallthru
          _
      $region36: #{tpu_custom_call.1} parent=5 // pred_fallthru
        _
      %p283 = scmp.le.s32.totalorder 1, %s20
      %p284 = scmp.lt.s32.totalorder %s20, 3
      %p285 = pnand %p283, %p284
      %p286 = pneg %p285
      // Predicated region
      $region41: #{tpu_custom_call.1} parent=5 // pred_check
        _
      $region42: #{tpu_custom_call.1} parent=5 // pred_check_branch
        %288 = sbr.rel (%p285) target = $region44
      $region43: #{tpu_custom_call.1} parent=5 // pred_region
        %s289 = ssub.s32 %s20, 1
        %s290 = sand.u32 %s45, 1
        %s291 = scalar_lea.sflag [#allocation7], %s290
        %s292 = sand.u32 %s45, 1
        %s293 = smul.addr %s292, 4
        %s294 = scalar_lea.vmem [#allocation6], %s293
        // Predicated region
        $region45: #{tpu_custom_call.1} parent=43 // pred_check
          %p295 = pneg %p58
        $region46: #{tpu_custom_call.1} parent=43 // pred_check_branch
          %297 = sbr.rel (%p295) target = $region48
        $region47: #{tpu_custom_call.1} parent=43 // pred_region
          %298 = dma.done %s291, 64
        $region48: #{tpu_custom_call.1} parent=43 // pred_fallthru
          _
        // Predicated region
        $region49: #{tpu_custom_call.1} parent=43 // pred_check
          %p299 = pneg %p79
        $region50: #{tpu_custom_call.1} parent=43 // pred_check_branch
          %301 = sbr.rel (%p299) target = $region52
        $region51: #{tpu_custom_call.1} parent=43 // pred_region
          %302 = dma.done [#allocation10], 256
        $region52: #{tpu_custom_call.1} parent=43 // pred_fallthru
          _
        // Predicated region
        $region53: #{tpu_custom_call.1} parent=43 // pred_check
          %p303 = pneg %p100
        $region54: #{tpu_custom_call.1} parent=43 // pred_check_branch
          %305 = sbr.rel (%p303) target = $region56
        $region55: #{tpu_custom_call.1} parent=43 // pred_region
          %306 = dma.done [#allocation10], 256
        $region56: #{tpu_custom_call.1} parent=43 // pred_fallthru
          _
        // Predicated region
        $region57: #{tpu_custom_call.1} parent=43 // pred_check
          %p307 = pneg %p121
        $region58: #{tpu_custom_call.1} parent=43 // pred_check_branch
          %309 = sbr.rel (%p307) target = $region60
        $region59: #{tpu_custom_call.1} parent=43 // pred_region
          %310 = dma.done [#allocation13], 256
        $region60: #{tpu_custom_call.1} parent=43 // pred_fallthru
          _
        // Predicated region
        $region61: #{tpu_custom_call.1} parent=43 // pred_check
          %p311 = pneg %p142
        $region62: #{tpu_custom_call.1} parent=43 // pred_check_branch
          %313 = sbr.rel (%p311) target = $region64
        $region63: #{tpu_custom_call.1} parent=43 // pred_region
          %314 = dma.done [#allocation13], 256
        $region64: #{tpu_custom_call.1} parent=43 // pred_fallthru
          _
        %s315 = sand.u32 %s45, 1
        %s316 = scalar_lea.sflag [#allocation7], %s315
        %s317 = sand.u32 %s45, 1
        %s318 = smul.addr %s317, 4
        %s319 = scalar_lea.vmem [#allocation6], %s318
        %p320 = pneg %p58
        %p321 = pneg %p55
        %p322 = pneg %p79
        %p323 = pneg %p76
        %p324 = pneg %p100
        %p325 = pneg %p97
        %p326 = pneg %p121
        %p327 = pneg %p118
        %p328 = pneg %p142
        %p329 = pneg %p139
        %p330 = pneg %p163
        %p331 = pneg %p160
        %p332 = pneg %p191
        %p333 = pneg %p188
        %s334 = sand.u32 %s178, 1
        %s335 = scalar_lea.sflag [#allocation8], %s334
        %s336 = sand.u32 %s178, 1
        %s337 = smul.addr %s336, 8
        %s338 = scalar_lea.vmem [#allocation15], %s337
        %p340 = scmp.eq.s32.totalorder %s30, 0
        // Predicated region
        $region65: #{tpu_custom_call.1} parent=43 // pred_check
          %p341 = pneg %p340
        $region66: #{tpu_custom_call.1} parent=43 // pred_check_branch
          %343 = sbr.rel (%p341) target = $region68
        $region67: #{tpu_custom_call.1} parent=43 // pred_region
          %v344 = vld [vmem:[%s294] sm:$0xf]
          %v345 = vld [vmem:[#allocation11] sm:$0xf]
          %v346 = vld [vmem:[#allocation11 + $0x4] sm:$0xf]
          %v347 = vld [vmem:[#allocation11 + $0x8] sm:$0xf]
          %v348 = vld [vmem:[#allocation11 + $0xc] sm:$0xf]
          %v353 = vunpack.c.l.b16 %v345
          %v354 = vunpack.c.l.b16 %v346
          %v355 = vunpack.c.l.b16 %v347
          %v356 = vunpack.c.l.b16 %v348
          %v357 = vpack.c.b16 %v354, %v353
          %v358 = vpack.c.b16 %v356, %v355
          %vm361 = vcmask 261120
          %v363 = vsel %vm361, %v344, 0
          %365 = vmatprep.subr.bf16.mxu0 0
          %366 = vmatpush1.bf16.msra.mxu0 0
          %367 = vmatprep.subr.bf16.mxu0 0
          %368 = vmatpush1.bf16.msra.mxu0 0
          %369 = vmatprep.subr.bf16.mxu0 0
          %370 = vmatpush1.bf16.msra.mxu0 0
          %371 = vmatprep.subr.bf16.mxu0 0
          %372 = vmatpush1.bf16.msra.mxu0 0
          %373 = vmatprep.subr.bf16.mxu0 0
          %374 = vmatpush1.bf16.msra.mxu0 0
          %375 = vmatprep.subr.bf16.mxu0 0
          %376 = vmatpush1.bf16.msra.mxu0 0
          %377 = vmatprep.subr.bf16.mxu0 0
          %378 = vmatpush1.bf16.msra.mxu0 %v358
          %379 = vmatprep.subr.bf16.mxu0 0
          %380 = vmatpush1.bf16.msra.mxu0 %v357
          %381 = vmatprep.subr.bf16.mxu0 0
          %382 = vmatpush2.bf16.msra.mxu0 0
          %383 = vmatprep.subr.bf16.mxu0 0
          %384 = vmatpush2.bf16.msra.mxu0 0
          %385 = vmatprep.subr.bf16.mxu0 0
          %386 = vmatpush2.bf16.msra.mxu0 0
          %387 = vmatprep.subr.bf16.mxu0 0
          %388 = vmatpush2.bf16.msra.mxu0 0
          %389 = vmatprep.subr.bf16.mxu0 0
          %390 = vmatpush2.bf16.msra.mxu0 0
          %391 = vmatprep.subr.bf16.mxu0 0
          %392 = vmatpush2.bf16.msra.mxu0 0
          %393 = vmatprep.subr.bf16.mxu0 0
          %394 = vmatpush2.bf16.msra.mxu0 0
          %395 = vmatprep.subr.bf16.mxu0 0
          %396 = vmatpush2.bf16.msra.mxu0 0
          %397 = vmatprep.mubr.bf16.mxu0 0
          %398 = vmatmul.mubr.bf16.gmra.mxu0 %v363
          %v399 = vpop.f32.mrf.mxu0
          %v400 = vadd.f32 0.0, %v399
          %v401 = vpop.f32.mrf.mxu0
          %v402 = vpop.f32.mrf.mxu0
          %v403 = vpop.f32.mrf.mxu0
          %404 = vdwg.mxu0
          %v405 = vpack.c.bf16 %v400, %v400
          %vm406 = vcmask 257024
          %407 = vst.msk [vmem:[#allocation2] sm:$0xf] %vm406, %v405
          %v408 = vld [vmem:[#allocation12] sm:$0xf]
          %v409 = vld [vmem:[#allocation12 + $0x4] sm:$0xf]
          %v410 = vld [vmem:[#allocation12 + $0x8] sm:$0xf]
          %v411 = vld [vmem:[#allocation12 + $0xc] sm:$0xf]
          %v416 = vunpack.c.l.b16 %v408
          %v417 = vunpack.c.l.b16 %v409
          %v418 = vunpack.c.l.b16 %v410
          %v419 = vunpack.c.l.b16 %v411
          %v420 = vpack.c.b16 %v417, %v416
          %v421 = vpack.c.b16 %v419, %v418
          %424 = vmatprep.subr.bf16.mxu0 0
          %425 = vmatpush1.bf16.msra.mxu0 0
          %426 = vmatprep.subr.bf16.mxu0 0
          %427 = vmatpush1.bf16.msra.mxu0 0
          %428 = vmatprep.subr.bf16.mxu0 0
          %429 = vmatpush1.bf16.msra.mxu0 0
          %430 = vmatprep.subr.bf16.mxu0 0
          %431 = vmatpush1.bf16.msra.mxu0 0
          %432 = vmatprep.subr.bf16.mxu0 0
          %433 = vmatpush1.bf16.msra.mxu0 0
          %434 = vmatprep.subr.bf16.mxu0 0
          %435 = vmatpush1.bf16.msra.mxu0 0
          %436 = vmatprep.subr.bf16.mxu0 0
          %437 = vmatpush1.bf16.msra.mxu0 %v421
          %438 = vmatprep.subr.bf16.mxu0 0
          %439 = vmatpush1.bf16.msra.mxu0 %v420
          %440 = vmatprep.subr.bf16.mxu0 0
          %441 = vmatpush2.bf16.msra.mxu0 0
          %442 = vmatprep.subr.bf16.mxu0 0
          %443 = vmatpush2.bf16.msra.mxu0 0
          %444 = vmatprep.subr.bf16.mxu0 0
          %445 = vmatpush2.bf16.msra.mxu0 0
          %446 = vmatprep.subr.bf16.mxu0 0
          %447 = vmatpush2.bf16.msra.mxu0 0
          %448 = vmatprep.subr.bf16.mxu0 0
          %449 = vmatpush2.bf16.msra.mxu0 0
          %450 = vmatprep.subr.bf16.mxu0 0
          %451 = vmatpush2.bf16.msra.mxu0 0
          %452 = vmatprep.subr.bf16.mxu0 0
          %453 = vmatpush2.bf16.msra.mxu0 0
          %454 = vmatprep.subr.bf16.mxu0 0
          %455 = vmatpush2.bf16.msra.mxu0 0
          %456 = vmatprep.mubr.bf16.mxu0 0
          %457 = vmatmul.mubr.bf16.gmra.mxu0 %v363
          %v458 = vpop.f32.mrf.mxu0
          %v459 = vadd.f32 0.0, %v458
          %v460 = vpop.f32.mrf.mxu0
          %v461 = vpop.f32.mrf.mxu0
          %v462 = vpop.f32.mrf.mxu0
          %463 = vdwg.mxu0
          %v464 = vpack.c.bf16 %v459, %v459
          %465 = vst.msk [vmem:[#allocation3] sm:$0xf] %vm406, %v464
        $region68: #{tpu_custom_call.1} parent=43 // pred_fallthru
          _
        %s466 = smul.u32 %s30, 8
        %s467 = sshra.s32 %s466, 3
        %s468 = sand.u32 %s466, 7
        %s469 = smul.addr %s467, 4
        %s470 = scalar_lea.vmem %s294, %s469 [#allocation6]
        %v471 = vld [vmem:[%s470] sm:$0xf]
        %v472 = vld [vmem:[#allocation9] sm:$0xf]
        %v473 = vld [vmem:[#allocation9 + $0x4] sm:$0xf]
        %v474 = vld [vmem:[#allocation9 + $0x8] sm:$0xf]
        %v475 = vld [vmem:[#allocation9 + $0xc] sm:$0xf]
        %v480 = vunpack.c.l.b16 %v472
        %v481 = vunpack.c.l.b16 %v473
        %v482 = vunpack.c.l.b16 %v474
        %v483 = vunpack.c.l.b16 %v475
        %v484 = vpack.c.b16 %v481, %v480
        %v485 = vpack.c.b16 %v483, %v482
        %vm488 = vcmask 261120
        %v490 = vsel %vm488, %v471, 0
        %492 = vmatprep.subr.bf16.mxu0 0
        %493 = vmatpush1.bf16.msra.mxu0 0
        %494 = vmatprep.subr.bf16.mxu0 0
        %495 = vmatpush1.bf16.msra.mxu0 0
        %496 = vmatprep.subr.bf16.mxu0 0
        %497 = vmatpush1.bf16.msra.mxu0 0
        %498 = vmatprep.subr.bf16.mxu0 0
        %499 = vmatpush1.bf16.msra.mxu0 0
        %500 = vmatprep.subr.bf16.mxu0 0
        %501 = vmatpush1.bf16.msra.mxu0 0
        %502 = vmatprep.subr.bf16.mxu0 0
        %503 = vmatpush1.bf16.msra.mxu0 0
        %504 = vmatprep.subr.bf16.mxu0 0
        %505 = vmatpush1.bf16.msra.mxu0 %v485
        %506 = vmatprep.subr.bf16.mxu0 0
        %507 = vmatpush1.bf16.msra.mxu0 %v484
        %508 = vmatprep.subr.bf16.mxu0 0
        %509 = vmatpush2.bf16.msra.mxu0 0
        %510 = vmatprep.subr.bf16.mxu0 0
        %511 = vmatpush2.bf16.msra.mxu0 0
        %512 = vmatprep.subr.bf16.mxu0 0
        %513 = vmatpush2.bf16.msra.mxu0 0
        %514 = vmatprep.subr.bf16.mxu0 0
        %515 = vmatpush2.bf16.msra.mxu0 0
        %516 = vmatprep.subr.bf16.mxu0 0
        %517 = vmatpush2.bf16.msra.mxu0 0
        %518 = vmatprep.subr.bf16.mxu0 0
        %519 = vmatpush2.bf16.msra.mxu0 0
        %520 = vmatprep.subr.bf16.mxu0 0
        %521 = vmatpush2.bf16.msra.mxu0 0
        %522 = vmatprep.subr.bf16.mxu0 0
        %523 = vmatpush2.bf16.msra.mxu0 0
        %524 = vmatprep.mubr.bf16.mxu0 0
        %525 = vmatmul.mubr.bf16.gmra.mxu0 %v490
        %v526 = vpop.f32.mrf.mxu0
        %v527 = vadd.f32 0.0, %v526
        %v528 = vpop.f32.mrf.mxu0
        %v529 = vpop.f32.mrf.mxu0
        %v530 = vpop.f32.mrf.mxu0
        %531 = vdwg.mxu0
        %v532 = vpack.c.bf16 %v527, %v527
        %vm533 = vcmask 257024
        %534 = vst.msk [vmem:[#allocation4] sm:$0xf] %vm533, %v532
        %v535 = vld [vmem:[#allocation4] sm:$0xf]
        %v536 = vld [vmem:[#allocation2] sm:$0xf]
        %v537 = vld [vmem:[#allocation3] sm:$0xf]
        %vm538 = vcmask 64512
        %v540 = vsel %vm538, %v535, 0
        %v543 = vsel %vm538, %v536, 0
        %545 = vmatprep.subr.bf16.mxu0 0
        %546 = vmatpush1.bf16.xpose.msra.mxu0 0
        %547 = vmatprep.subr.bf16.mxu0 0
        %548 = vmatpush1.bf16.xpose.msra.mxu0 0
        %549 = vmatprep.subr.bf16.mxu0 0
        %550 = vmatpush1.bf16.xpose.msra.mxu0 0
        %551 = vmatprep.subr.bf16.mxu0 0
        %552 = vmatpush1.bf16.xpose.msra.mxu0 0
        %553 = vmatprep.subr.bf16.mxu0 0
        %554 = vmatpush1.bf16.xpose.msra.mxu0 0
        %555 = vmatprep.subr.bf16.mxu0 0
        %556 = vmatpush1.bf16.xpose.msra.mxu0 0
        %557 = vmatprep.subr.bf16.mxu0 0
        %558 = vmatpush1.bf16.xpose.msra.mxu0 0
        %559 = vmatprep.subr.bf16.mxu0 0
        %560 = vmatpush1.bf16.xpose.msra.mxu0 %v543
        %561 = vmatprep.subr.bf16.mxu0 0
        %562 = vmatpush2.bf16.xpose.msra.mxu0 0
        %563 = vmatprep.subr.bf16.mxu0 0
        %564 = vmatpush2.bf16.xpose.msra.mxu0 0
        %565 = vmatprep.subr.bf16.mxu0 0
        %566 = vmatpush2.bf16.xpose.msra.mxu0 0
        %567 = vmatprep.subr.bf16.mxu0 0
        %568 = vmatpush2.bf16.xpose.msra.mxu0 0
        %569 = vmatprep.subr.bf16.mxu0 0
        %570 = vmatpush2.bf16.xpose.msra.mxu0 0
        %571 = vmatprep.subr.bf16.mxu0 0
        %572 = vmatpush2.bf16.xpose.msra.mxu0 0
        %573 = vmatprep.subr.bf16.mxu0 0
        %574 = vmatpush2.bf16.xpose.msra.mxu0 0
        %575 = vmatprep.subr.bf16.mxu0 0
        %576 = vmatpush2.bf16.xpose.msra.mxu0 0
        %577 = vmatprep.mubr.bf16.mxu0 0
        %578 = vmatmul.mubr.bf16.gmra.mxu0 %v540
        %v579 = vpop.f32.mrf.mxu0
        %v580 = vadd.f32 0.0, %v579
        %v581 = vpop.f32.mrf.mxu0
        %v582 = vpop.f32.mrf.mxu0
        %v583 = vpop.f32.mrf.mxu0
        %584 = vdwg.mxu0
        %v585 = vsel %vm538, %v580, -inf
        %586 = vmax.xlane.f32.xlu0 %v585
        %v587 = vpop.xlane.xlu0 %586
        %v588 = vsub.f32 %v580, %v587
        %v589 = vmul.f32 %v588, 1.442695
        %v590 = vpow.pop %v589
        %v591 = vsel %vm538, %v590, 0.0
        %592 = vadd.xlane.f32.xlu0 %v591
        %v593 = vpop.xlane.xlu0 %592
        %v594 = vrcp.pop %v593
        %v595 = vpack.c.bf16 %v590, %v590
        %v597 = vsel %vm538, %v595, 0
        %vm599 = vcmask 1043456
        %v601 = vsel %vm599, %v537, 0
        %603 = vmatprep.subr.bf16.mxu0 0
        %604 = vmatpush1.bf16.msra.mxu0 0
        %605 = vmatprep.subr.bf16.mxu0 0
        %606 = vmatpush1.bf16.msra.mxu0 0
        %607 = vmatprep.subr.bf16.mxu0 0
        %608 = vmatpush1.bf16.msra.mxu0 0
        %609 = vmatprep.subr.bf16.mxu0 0
        %610 = vmatpush1.bf16.msra.mxu0 0
        %611 = vmatprep.subr.bf16.mxu0 0
        %612 = vmatpush1.bf16.msra.mxu0 0
        %613 = vmatprep.subr.bf16.mxu0 0
        %614 = vmatpush1.bf16.msra.mxu0 0
        %615 = vmatprep.subr.bf16.mxu0 0
        %616 = vmatpush1.bf16.msra.mxu0 0
        %617 = vmatprep.subr.bf16.mxu0 0
        %618 = vmatpush1.bf16.msra.mxu0 %v601
        %619 = vmatprep.subr.bf16.mxu0 0
        %620 = vmatpush2.bf16.msra.mxu0 0
        %621 = vmatprep.subr.bf16.mxu0 0
        %622 = vmatpush2.bf16.msra.mxu0 0
        %623 = vmatprep.subr.bf16.mxu0 0
        %624 = vmatpush2.bf16.msra.mxu0 0
        %625 = vmatprep.subr.bf16.mxu0 0
        %626 = vmatpush2.bf16.msra.mxu0 0
        %627 = vmatprep.subr.bf16.mxu0 0
        %628 = vmatpush2.bf16.msra.mxu0 0
        %629 = vmatprep.subr.bf16.mxu0 0
        %630 = vmatpush2.bf16.msra.mxu0 0
        %631 = vmatprep.subr.bf16.mxu0 0
        %632 = vmatpush2.bf16.msra.mxu0 0
        %633 = vmatprep.subr.bf16.mxu0 0
        %634 = vmatpush2.bf16.msra.mxu0 0
        %635 = vmatprep.mubr.bf16.mxu0 0
        %636 = vmatmul.mubr.bf16.gmra.mxu0 %v597
        %v637 = vpop.f32.mrf.mxu0
        %v638 = vadd.f32 0.0, %v637
        %v639 = vpop.f32.mrf.mxu0
        %v640 = vpop.f32.mrf.mxu0
        %v641 = vpop.f32.mrf.mxu0
        %642 = vdwg.mxu0
        %v643 = vmul.f32 %v638, %v594
        %v644 = vpack.c.bf16 %v643, %v643
        %vm645 = vcmask 60416
        %646 = vst.msk [vmem:[#allocation5] sm:$0xf] %vm645, %v644
        %v647 = vld [vmem:[#allocation4] sm:$0xf]
        %v648 = vld [vmem:[#allocation2] sm:$0xf]
        %v649 = vld [vmem:[#allocation3] sm:$0xf]
        %v651 = vunpack.c.l.b16 %v647
        %v652 = vpack.c.b16 %v651, %v651
        %653 = vrot.lane.b32.xlu0 %v652, 120
        %v654 = vpop.permute.xlu0 %653
        %v656 = vunpack.c.l.b16 %v648
        %v657 = vpack.c.b16 %v656, %v656
        %658 = vrot.lane.b32.xlu0 %v657, 120
        %v659 = vpop.permute.xlu0 %658
        %v661 = vsel %vm538, %v654, 0
        %v664 = vsel %vm538, %v659, 0
        %666 = vmatprep.subr.bf16.mxu0 0
        %667 = vmatpush1.bf16.xpose.msra.mxu0 0
        %668 = vmatprep.subr.bf16.mxu0 0
        %669 = vmatpush1.bf16.xpose.msra.mxu0 0
        %670 = vmatprep.subr.bf16.mxu0 0
        %671 = vmatpush1.bf16.xpose.msra.mxu0 0
        %672 = vmatprep.subr.bf16.mxu0 0
        %673 = vmatpush1.bf16.xpose.msra.mxu0 0
        %674 = vmatprep.subr.bf16.mxu0 0
        %675 = vmatpush1.bf16.xpose.msra.mxu0 0
        %676 = vmatprep.subr.bf16.mxu0 0
        %677 = vmatpush1.bf16.xpose.msra.mxu0 0
        %678 = vmatprep.subr.bf16.mxu0 0
        %679 = vmatpush1.bf16.xpose.msra.mxu0 0
        %680 = vmatprep.subr.bf16.mxu0 0
        %681 = vmatpush1.bf16.xpose.msra.mxu0 %v664
        %682 = vmatprep.subr.bf16.mxu0 0
        %683 = vmatpush2.bf16.xpose.msra.mxu0 0
        %684 = vmatprep.subr.bf16.mxu0 0
        %685 = vmatpush2.bf16.xpose.msra.mxu0 0
        %686 = vmatprep.subr.bf16.mxu0 0
        %687 = vmatpush2.bf16.xpose.msra.mxu0 0
        %688 = vmatprep.subr.bf16.mxu0 0
        %689 = vmatpush2.bf16.xpose.msra.mxu0 0
        %690 = vmatprep.subr.bf16.mxu0 0
        %691 = vmatpush2.bf16.xpose.msra.mxu0 0
        %692 = vmatprep.subr.bf16.mxu0 0
        %693 = vmatpush2.bf16.xpose.msra.mxu0 0
        %694 = vmatprep.subr.bf16.mxu0 0
        %695 = vmatpush2.bf16.xpose.msra.mxu0 0
        %696 = vmatprep.subr.bf16.mxu0 0
        %697 = vmatpush2.bf16.xpose.msra.mxu0 0
        %698 = vmatprep.mubr.bf16.mxu0 0
        %699 = vmatmul.mubr.bf16.gmra.mxu0 %v661
        %v700 = vpop.f32.mrf.mxu0
        %v701 = vadd.f32 0.0, %v700
        %v702 = vpop.f32.mrf.mxu0
        %v703 = vpop.f32.mrf.mxu0
        %v704 = vpop.f32.mrf.mxu0
        %705 = vdwg.mxu0
        %v706 = vsel %vm538, %v701, -inf
        %707 = vmax.xlane.f32.xlu0 %v706
        %v708 = vpop.xlane.xlu0 %707
        %v709 = vsub.f32 %v701, %v708
        %v710 = vmul.f32 %v709, 1.442695
        %v711 = vpow.pop %v710
        %v712 = vsel %vm538, %v711, 0.0
        %713 = vadd.xlane.f32.xlu0 %v712
        %v714 = vpop.xlane.xlu0 %713
        %v715 = vrcp.pop %v714
        %v716 = vpack.c.bf16 %v711, %v711
        %v718 = vunpack.c.l.b16 %v649
        %v719 = vpack.c.b16 %v718, %v718
        %720 = vrot.lane.b32.xlu0 %v719, 120
        %v721 = vpop.permute.xlu0 %720
        %v723 = vsel %vm538, %v716, 0
        %v726 = vsel %vm599, %v721, 0
        %728 = vmatprep.subr.bf16.mxu0 0
        %729 = vmatpush1.bf16.msra.mxu0 0
        %730 = vmatprep.subr.bf16.mxu0 0
        %731 = vmatpush1.bf16.msra.mxu0 0
        %732 = vmatprep.subr.bf16.mxu0 0
        %733 = vmatpush1.bf16.msra.mxu0 0
        %734 = vmatprep.subr.bf16.mxu0 0
        %735 = vmatpush1.bf16.msra.mxu0 0
        %736 = vmatprep.subr.bf16.mxu0 0
        %737 = vmatpush1.bf16.msra.mxu0 0
        %738 = vmatprep.subr.bf16.mxu0 0
        %739 = vmatpush1.bf16.msra.mxu0 0
        %740 = vmatprep.subr.bf16.mxu0 0
        %741 = vmatpush1.bf16.msra.mxu0 0
        %742 = vmatprep.subr.bf16.mxu0 0
        %743 = vmatpush1.bf16.msra.mxu0 %v726
        %744 = vmatprep.subr.bf16.mxu0 0
        %745 = vmatpush2.bf16.msra.mxu0 0
        %746 = vmatprep.subr.bf16.mxu0 0
        %747 = vmatpush2.bf16.msra.mxu0 0
        %748 = vmatprep.subr.bf16.mxu0 0
        %749 = vmatpush2.bf16.msra.mxu0 0
        %750 = vmatprep.subr.bf16.mxu0 0
        %751 = vmatpush2.bf16.msra.mxu0 0
        %752 = vmatprep.subr.bf16.mxu0 0
        %753 = vmatpush2.bf16.msra.mxu0 0
        %754 = vmatprep.subr.bf16.mxu0 0
        %755 = vmatpush2.bf16.msra.mxu0 0
        %756 = vmatprep.subr.bf16.mxu0 0
        %757 = vmatpush2.bf16.msra.mxu0 0
        %758 = vmatprep.subr.bf16.mxu0 0
        %759 = vmatpush2.bf16.msra.mxu0 0
        %760 = vmatprep.mubr.bf16.mxu0 0
        %761 = vmatmul.mubr.bf16.gmra.mxu0 %v723
        %v762 = vpop.f32.mrf.mxu0
        %v763 = vadd.f32 0.0, %v762
        %v764 = vpop.f32.mrf.mxu0
        %v765 = vpop.f32.mrf.mxu0
        %v766 = vpop.f32.mrf.mxu0
        %767 = vdwg.mxu0
        %v768 = vmul.f32 %v763, %v715
        %v769 = vpack.c.bf16 %v768, %v768
        %v771 = vunpack.c.l.b16 %v769
        %v772 = vpack.c.b16 %v771, %v771
        %773 = vrot.lane.b32.xlu0 %v772, 8
        %v774 = vpop.permute.xlu0 %773
        %vm776 = vcmask 126016
        %777 = vst.msk [vmem:[#allocation5] sm:$0xf] %vm776, %v774
        %v778 = vld [vmem:[#allocation4] sm:$0xf]
        %v779 = vld [vmem:[#allocation2] sm:$0xf]
        %v780 = vld [vmem:[#allocation3] sm:$0xf]
        %v782 = vunpack.c.l.b16 %v778
        %v783 = vpack.c.b16 %v782, %v782
        %784 = vrot.lane.b32.xlu0 %v783, 112
        %v785 = vpop.permute.xlu0 %784
        %v787 = vunpack.c.l.b16 %v779
        %v788 = vpack.c.b16 %v787, %v787
        %789 = vrot.lane.b32.xlu0 %v788, 112
        %v790 = vpop.permute.xlu0 %789
        %v792 = vsel %vm538, %v785, 0
        %v795 = vsel %vm538, %v790, 0
        %797 = vmatprep.subr.bf16.mxu0 0
        %798 = vmatpush1.bf16.xpose.msra.mxu0 0
        %799 = vmatprep.subr.bf16.mxu0 0
        %800 = vmatpush1.bf16.xpose.msra.mxu0 0
        %801 = vmatprep.subr.bf16.mxu0 0
        %802 = vmatpush1.bf16.xpose.msra.mxu0 0
        %803 = vmatprep.subr.bf16.mxu0 0
        %804 = vmatpush1.bf16.xpose.msra.mxu0 0
        %805 = vmatprep.subr.bf16.mxu0 0
        %806 = vmatpush1.bf16.xpose.msra.mxu0 0
        %807 = vmatprep.subr.bf16.mxu0 0
        %808 = vmatpush1.bf16.xpose.msra.mxu0 0
        %809 = vmatprep.subr.bf16.mxu0 0
        %810 = vmatpush1.bf16.xpose.msra.mxu0 0
        %811 = vmatprep.subr.bf16.mxu0 0
        %812 = vmatpush1.bf16.xpose.msra.mxu0 %v795
        %813 = vmatprep.subr.bf16.mxu0 0
        %814 = vmatpush2.bf16.xpose.msra.mxu0 0
        %815 = vmatprep.subr.bf16.mxu0 0
        %816 = vmatpush2.bf16.xpose.msra.mxu0 0
        %817 = vmatprep.subr.bf16.mxu0 0
        %818 = vmatpush2.bf16.xpose.msra.mxu0 0
        %819 = vmatprep.subr.bf16.mxu0 0
        %820 = vmatpush2.bf16.xpose.msra.mxu0 0
        %821 = vmatprep.subr.bf16.mxu0 0
        %822 = vmatpush2.bf16.xpose.msra.mxu0 0
        %823 = vmatprep.subr.bf16.mxu0 0
        %824 = vmatpush2.bf16.xpose.msra.mxu0 0
        %825 = vmatprep.subr.bf16.mxu0 0
        %826 = vmatpush2.bf16.xpose.msra.mxu0 0
        %827 = vmatprep.subr.bf16.mxu0 0
        %828 = vmatpush2.bf16.xpose.msra.mxu0 0
        %829 = vmatprep.mubr.bf16.mxu0 0
        %830 = vmatmul.mubr.bf16.gmra.mxu0 %v792
        %v831 = vpop.f32.mrf.mxu0
        %v832 = vadd.f32 0.0, %v831
        %v833 = vpop.f32.mrf.mxu0
        %v834 = vpop.f32.mrf.mxu0
        %v835 = vpop.f32.mrf.mxu0
        %836 = vdwg.mxu0
        %v837 = vsel %vm538, %v832, -inf
        %838 = vmax.xlane.f32.xlu0 %v837
        %v839 = vpop.xlane.xlu0 %838
        %v840 = vsub.f32 %v832, %v839
        %v841 = vmul.f32 %v840, 1.442695
        %v842 = vpow.pop %v841
        %v843 = vsel %vm538, %v842, 0.0
        %844 = vadd.xlane.f32.xlu0 %v843
        %v845 = vpop.xlane.xlu0 %844
        %v846 = vrcp.pop %v845
        %v847 = vpack.c.bf16 %v842, %v842
        %v849 = vunpack.c.l.b16 %v780
        %v850 = vpack.c.b16 %v849, %v849
        %851 = vrot.lane.b32.xlu0 %v850, 112
        %v852 = vpop.permute.xlu0 %851
        %v854 = vsel %vm538, %v847, 0
        %v857 = vsel %vm599, %v852, 0
        %859 = vmatprep.subr.bf16.mxu0 0
        %860 = vmatpush1.bf16.msra.mxu0 0
        %861 = vmatprep.subr.bf16.mxu0 0
        %862 = vmatpush1.bf16.msra.mxu0 0
        %863 = vmatprep.subr.bf16.mxu0 0
        %864 = vmatpush1.bf16.msra.mxu0 0
        %865 = vmatprep.subr.bf16.mxu0 0
        %866 = vmatpush1.bf16.msra.mxu0 0
        %867 = vmatprep.subr.bf16.mxu0 0
        %868 = vmatpush1.bf16.msra.mxu0 0
        %869 = vmatprep.subr.bf16.mxu0 0
        %870 = vmatpush1.bf16.msra.mxu0 0
        %871 = vmatprep.subr.bf16.mxu0 0
        %872 = vmatpush1.bf16.msra.mxu0 0
        %873 = vmatprep.subr.bf16.mxu0 0
        %874 = vmatpush1.bf16.msra.mxu0 %v857
        %875 = vmatprep.subr.bf16.mxu0 0
        %876 = vmatpush2.bf16.msra.mxu0 0
        %877 = vmatprep.subr.bf16.mxu0 0
        %878 = vmatpush2.bf16.msra.mxu0 0
        %879 = vmatprep.subr.bf16.mxu0 0
        %880 = vmatpush2.bf16.msra.mxu0 0
        %881 = vmatprep.subr.bf16.mxu0 0
        %882 = vmatpush2.bf16.msra.mxu0 0
        %883 = vmatprep.subr.bf16.mxu0 0
        %884 = vmatpush2.bf16.msra.mxu0 0
        %885 = vmatprep.subr.bf16.mxu0 0
        %886 = vmatpush2.bf16.msra.mxu0 0
        %887 = vmatprep.subr.bf16.mxu0 0
        %888 = vmatpush2.bf16.msra.mxu0 0
        %889 = vmatprep.subr.bf16.mxu0 0
        %890 = vmatpush2.bf16.msra.mxu0 0
        %891 = vmatprep.mubr.bf16.mxu0 0
        %892 = vmatmul.mubr.bf16.gmra.mxu0 %v854
        %v893 = vpop.f32.mrf.mxu0
        %v894 = vadd.f32 0.0, %v893
        %v895 = vpop.f32.mrf.mxu0
        %v896 = vpop.f32.mrf.mxu0
        %v897 = vpop.f32.mrf.mxu0
        %898 = vdwg.mxu0
        %v899 = vmul.f32 %v894, %v846
        %v900 = vpack.c.bf16 %v899, %v899
        %v902 = vunpack.c.l.b16 %v900
        %v903 = vpack.c.b16 %v902, %v902
        %904 = vrot.lane.b32.xlu0 %v903, 16
        %v905 = vpop.permute.xlu0 %904
        %vm907 = vcmask 191616
        %908 = vst.msk [vmem:[#allocation5] sm:$0xf] %vm907, %v905
        %v909 = vld [vmem:[#allocation4] sm:$0xf]
        %v910 = vld [vmem:[#allocation2] sm:$0xf]
        %v911 = vld [vmem:[#allocation3] sm:$0xf]
        %v913 = vunpack.c.l.b16 %v909
        %v914 = vpack.c.b16 %v913, %v913
        %915 = vrot.lane.b32.xlu0 %v914, 104
        %v916 = vpop.permute.xlu0 %915
        %v918 = vunpack.c.l.b16 %v910
        %v919 = vpack.c.b16 %v918, %v918
        %920 = vrot.lane.b32.xlu0 %v919, 104
        %v921 = vpop.permute.xlu0 %920
        %v923 = vsel %vm538, %v916, 0
        %v926 = vsel %vm538, %v921, 0
        %928 = vmatprep.subr.bf16.mxu0 0
        %929 = vmatpush1.bf16.xpose.msra.mxu0 0
        %930 = vmatprep.subr.bf16.mxu0 0
        %931 = vmatpush1.bf16.xpose.msra.mxu0 0
        %932 = vmatprep.subr.bf16.mxu0 0
        %933 = vmatpush1.bf16.xpose.msra.mxu0 0
        %934 = vmatprep.subr.bf16.mxu0 0
        %935 = vmatpush1.bf16.xpose.msra.mxu0 0
        %936 = vmatprep.subr.bf16.mxu0 0
        %937 = vmatpush1.bf16.xpose.msra.mxu0 0
        %938 = vmatprep.subr.bf16.mxu0 0
        %939 = vmatpush1.bf16.xpose.msra.mxu0 0
        %940 = vmatprep.subr.bf16.mxu0 0
        %941 = vmatpush1.bf16.xpose.msra.mxu0 0
        %942 = vmatprep.subr.bf16.mxu0 0
        %943 = vmatpush1.bf16.xpose.msra.mxu0 %v926
        %944 = vmatprep.subr.bf16.mxu0 0
        %945 = vmatpush2.bf16.xpose.msra.mxu0 0
        %946 = vmatprep.subr.bf16.mxu0 0
        %947 = vmatpush2.bf16.xpose.msra.mxu0 0
        %948 = vmatprep.subr.bf16.mxu0 0
        %949 = vmatpush2.bf16.xpose.msra.mxu0 0
        %950 = vmatprep.subr.bf16.mxu0 0
        %951 = vmatpush2.bf16.xpose.msra.mxu0 0
        %952 = vmatprep.subr.bf16.mxu0 0
        %953 = vmatpush2.bf16.xpose.msra.mxu0 0
        %954 = vmatprep.subr.bf16.mxu0 0
        %955 = vmatpush2.bf16.xpose.msra.mxu0 0
        %956 = vmatprep.subr.bf16.mxu0 0
        %957 = vmatpush2.bf16.xpose.msra.mxu0 0
        %958 = vmatprep.subr.bf16.mxu0 0
        %959 = vmatpush2.bf16.xpose.msra.mxu0 0
        %960 = vmatprep.mubr.bf16.mxu0 0
        %961 = vmatmul.mubr.bf16.gmra.mxu0 %v923
        %v962 = vpop.f32.mrf.mxu0
        %v963 = vadd.f32 0.0, %v962
        %v964 = vpop.f32.mrf.mxu0
        %v965 = vpop.f32.mrf.mxu0
        %v966 = vpop.f32.mrf.mxu0
        %967 = vdwg.mxu0
        %v968 = vsel %vm538, %v963, -inf
        %969 = vmax.xlane.f32.xlu0 %v968
        %v970 = vpop.xlane.xlu0 %969
        %v971 = vsub.f32 %v963, %v970
        %v972 = vmul.f32 %v971, 1.442695
        %v973 = vpow.pop %v972
        %v974 = vsel %vm538, %v973, 0.0
        %975 = vadd.xlane.f32.xlu0 %v974
        %v976 = vpop.xlane.xlu0 %975
        %v977 = vrcp.pop %v976
        %v978 = vpack.c.bf16 %v973, %v973
        %v980 = vunpack.c.l.b16 %v911
        %v981 = vpack.c.b16 %v980, %v980
        %982 = vrot.lane.b32.xlu0 %v981, 104
        %v983 = vpop.permute.xlu0 %982
        %v985 = vsel %vm538, %v978, 0
        %v988 = vsel %vm599, %v983, 0
        %990 = vmatprep.subr.bf16.mxu0 0
        %991 = vmatpush1.bf16.msra.mxu0 0
        %992 = vmatprep.subr.bf16.mxu0 0
        %993 = vmatpush1.bf16.msra.mxu0 0
        %994 = vmatprep.subr.bf16.mxu0 0
        %995 = vmatpush1.bf16.msra.mxu0 0
        %996 = vmatprep.subr.bf16.mxu0 0
        %997 = vmatpush1.bf16.msra.mxu0 0
        %998 = vmatprep.subr.bf16.mxu0 0
        %999 = vmatpush1.bf16.msra.mxu0 0
        %1000 = vmatprep.subr.bf16.mxu0 0
        %1001 = vmatpush1.bf16.msra.mxu0 0
        %1002 = vmatprep.subr.bf16.mxu0 0
        %1003 = vmatpush1.bf16.msra.mxu0 0
        %1004 = vmatprep.subr.bf16.mxu0 0
        %1005 = vmatpush1.bf16.msra.mxu0 %v988
        %1006 = vmatprep.subr.bf16.mxu0 0
        %1007 = vmatpush2.bf16.msra.mxu0 0
        %1008 = vmatprep.subr.bf16.mxu0 0
        %1009 = vmatpush2.bf16.msra.mxu0 0
        %1010 = vmatprep.subr.bf16.mxu0 0
        %1011 = vmatpush2.bf16.msra.mxu0 0
        %1012 = vmatprep.subr.bf16.mxu0 0
        %1013 = vmatpush2.bf16.msra.mxu0 0
        %1014 = vmatprep.subr.bf16.mxu0 0
        %1015 = vmatpush2.bf16.msra.mxu0 0
        %1016 = vmatprep.subr.bf16.mxu0 0
        %1017 = vmatpush2.bf16.msra.mxu0 0
        %1018 = vmatprep.subr.bf16.mxu0 0
        %1019 = vmatpush2.bf16.msra.mxu0 0
        %1020 = vmatprep.subr.bf16.mxu0 0
        %1021 = vmatpush2.bf16.msra.mxu0 0
        %1022 = vmatprep.mubr.bf16.mxu0 0
        %1023 = vmatmul.mubr.bf16.gmra.mxu0 %v985
        %v1024 = vpop.f32.mrf.mxu0
        %v1025 = vadd.f32 0.0, %v1024
        %v1026 = vpop.f32.mrf.mxu0
        %v1027 = vpop.f32.mrf.mxu0
        %v1028 = vpop.f32.mrf.mxu0
        %1029 = vdwg.mxu0
        %v1030 = vmul.f32 %v1025, %v977
        %v1031 = vpack.c.bf16 %v1030, %v1030
        %v1033 = vunpack.c.l.b16 %v1031
        %v1034 = vpack.c.b16 %v1033, %v1033
        %1035 = vrot.lane.b32.xlu0 %v1034, 24
        %v1036 = vpop.permute.xlu0 %1035
        %vm1038 = vcmask 257216
        %1039 = vst.msk [vmem:[#allocation5] sm:$0xf] %vm1038, %v1036
        %v1040 = vld [vmem:[#allocation5] sm:$0xf]
        %v1041 = vld [vmem:[#allocation14] sm:$0xf]
        %v1042 = vld [vmem:[#allocation14 + $0x4] sm:$0xf]
        %v1043 = vld [vmem:[#allocation14 + $0x8] sm:$0xf]
        %v1044 = vld [vmem:[#allocation14 + $0xc] sm:$0xf]
        %v1045 = vld [vmem:[%s5] sm:$0x1]
        %v1047 = vlaneseq
        %v1048 = vshrl.u32 %v1047, 7
        %v1049 = vsub.s32 0, %v1048
        %v1050 = vrot.slane %v1045, %v1049
        %v1056 = vunpack.c.l.b16 %v1041
        %v1057 = vunpack.c.l.b16 %v1042
        %v1058 = vunpack.c.l.b16 %v1043
        %v1059 = vunpack.c.l.b16 %v1044
        %v1060 = vpack.c.b16 %v1057, %v1056
        %v1061 = vpack.c.b16 %v1059, %v1058
        %v1065 = vsel %vm488, %v1040, 0
        %1067 = vmatprep.subr.bf16.mxu0 0
        %1068 = vmatpush1.bf16.msra.mxu0 0
        %1069 = vmatprep.subr.bf16.mxu0 0
        %1070 = vmatpush1.bf16.msra.mxu0 0
        %1071 = vmatprep.subr.bf16.mxu0 0
        %1072 = vmatpush1.bf16.msra.mxu0 0
        %1073 = vmatprep.subr.bf16.mxu0 0
        %1074 = vmatpush1.bf16.msra.mxu0 0
        %1075 = vmatprep.subr.bf16.mxu0 0
        %1076 = vmatpush1.bf16.msra.mxu0 0
        %1077 = vmatprep.subr.bf16.mxu0 0
        %1078 = vmatpush1.bf16.msra.mxu0 0
        %1079 = vmatprep.subr.bf16.mxu0 0
        %1080 = vmatpush1.bf16.msra.mxu0 %v1061
        %1081 = vmatprep.subr.bf16.mxu0 0
        %1082 = vmatpush1.bf16.msra.mxu0 %v1060
        %1083 = vmatprep.subr.bf16.mxu0 0
        %1084 = vmatpush2.bf16.msra.mxu0 0
        %1085 = vmatprep.subr.bf16.mxu0 0
        %1086 = vmatpush2.bf16.msra.mxu0 0
        %1087 = vmatprep.subr.bf16.mxu0 0
        %1088 = vmatpush2.bf16.msra.mxu0 0
        %1089 = vmatprep.subr.bf16.mxu0 0
        %1090 = vmatpush2.bf16.msra.mxu0 0
        %1091 = vmatprep.subr.bf16.mxu0 0
        %1092 = vmatpush2.bf16.msra.mxu0 0
        %1093 = vmatprep.subr.bf16.mxu0 0
        %1094 = vmatpush2.bf16.msra.mxu0 0
        %1095 = vmatprep.subr.bf16.mxu0 0
        %1096 = vmatpush2.bf16.msra.mxu0 0
        %1097 = vmatprep.subr.bf16.mxu0 0
        %1098 = vmatpush2.bf16.msra.mxu0 0
        %1099 = vmatprep.mubr.bf16.mxu0 0
        %1100 = vmatmul.mubr.bf16.gmra.mxu0 %v1065
        %v1101 = vpop.f32.mrf.mxu0
        %v1102 = vadd.f32 %v1050, %v1101
        %v1103 = vpop.f32.mrf.mxu0
        %v1104 = vpop.f32.mrf.mxu0
        %v1105 = vpop.f32.mrf.mxu0
        %1106 = vdwg.mxu0
        %1107 = vst.msk [vmem:[%s338] sm:$0xff] %vm488, %v1102
        %s1108 = sand.u32 %s178, 1
        %s1109 = scalar_lea.sflag [#allocation8], %s1108
        %s1110 = sand.u32 %s178, 1
        %s1111 = smul.addr %s1110, 8
        %s1112 = scalar_lea.vmem [#allocation15], %s1111
        // Predicated region
        $region69: #{tpu_custom_call.1} parent=43 // pred_check
          %p1113 = pneg %p188
        $region70: #{tpu_custom_call.1} parent=43 // pred_check_branch
          %1115 = sbr.rel (%p1113) target = $region72
        $region71: #{tpu_custom_call.1} parent=43 // pred_region
          %s1117 = ssub.s32 128, 128
          %1118 = vsyncadd %s1109, %s1117
          %s1119 = sadd.s32 %s30, %s29
          %s1120 = smul.addr %s1119, 128
          %s1121 = scalar_lea.hbm %s6, %s1120
          %s1123 = sshll.u32 %s1112, 4
          %s1124 = int_to_ptr.vmem [resolvable:$true] %s1123
          %1126 = dma.vmem_to_hbm [thread:$0]  %s1124, 128, %s1121, %s1109
        $region72: #{tpu_custom_call.1} parent=43 // pred_fallthru
          _
      $region44: #{tpu_custom_call.1} parent=5 // pred_fallthru
        _
      %p1127 = scmp.le.s32.totalorder 2, %s20
      // Predicated region
      $region73: #{tpu_custom_call.1} parent=5 // pred_check
        %p1128 = pneg %p1127
      $region74: #{tpu_custom_call.1} parent=5 // pred_check_branch
        %1130 = sbr.rel (%p1128) target = $region76
      $region75: #{tpu_custom_call.1} parent=5 // pred_region
        %s1131 = ssub.s32 %s20, 2
        // Predicated region
        $region77: #{tpu_custom_call.1} parent=75 // pred_check
          %p1132 = pneg %p194
        $region78: #{tpu_custom_call.1} parent=75 // pred_check_branch
          %1134 = sbr.rel (%p1132) target = $region80
        $region79: #{tpu_custom_call.1} parent=75 // pred_region
          %s1135 = sand.u32 %s179, 1
          %s1136 = scalar_lea.sflag [#allocation8], %s1135
          %s1137 = sand.u32 %s179, 1
          %s1138 = smul.addr %s1137, 8
          %s1139 = scalar_lea.vmem [#allocation15], %s1138
          %1140 = dma.done %s1136, 128
        $region80: #{tpu_custom_call.1} parent=75 // pred_fallthru
          _
      $region76: #{tpu_custom_call.1} parent=5 // pred_fallthru
        _
    $region6: #{tpu_custom_call.1} parent=1 // loop_footer
      %s24 = sadd.s32 1, %s20
    $region7: #{tpu_custom_call.1} parent=1 // loop_footer_branch
      %19 = sbr.rel target = $region3
    $region8: #{tpu_custom_call.1} parent=1 // loop_exit
      _
    %1141 = vsyncpa [#allocation7], 1
    %s1142 = scalar_lea.sflag [#allocation7], 1
    %1143 = vsyncpa %s1142, 1
    %1144 = vsyncpa [#allocation10], 1
    %1145 = vsyncpa [#allocation13], 1
    %1146 = vsyncpa [#allocation8], 1
    %s1147 = scalar_lea.sflag [#allocation8], 1
    %1148 = vsyncpa %s1147, 1

</llo_original>
